<compile_context>
chip_gen: v6e
topology: v6e:2x2x1
jax: 0.10.0
libtpu: 0.0.40
codegen_flags: <defaults>
</compile_context>

<pallas_src>
import functools

import jax
import jax.numpy as jnp
from jax import lax
from jax.experimental import pallas as pl
from jax.experimental.pallas import tpu as pltpu

LN_EPS = 1e-5
OUT_PAD = 128  # lane-dense fused (q1, q2) output width


# --------------------------------------------------------------------------- #
# Small helpers
# --------------------------------------------------------------------------- #
def _round_up(x, m):
    return (x + m - 1) // m * m


def _cdiv(a, b):
    return (a + b - 1) // b


def _sublane(dtype):
    # native sublane pack: f32 -> 8, bf16 -> 16, int8/fp8 -> 32
    return {2: 16, 1: 32}.get(jnp.dtype(dtype).itemsize, 8)


def _vmem_capacity_bytes():
    """Per-core VMEM capacity (device-aware; conservative fallback = v7x 64 MiB)."""
    try:
        info = pltpu.get_tpu_info()
        cap = getattr(info, "vmem_capacity_bytes", None)
        if cap:
            return int(cap)
    except Exception:
        pass
    return 64 * 1024 * 1024


def _prep(a, rows, cols, dt):
    """Pad/cast only when needed (avoids an extra HBM copy on the hot path)."""
    if a.shape == (rows, cols) and a.dtype == jnp.dtype(dt):
        return a
    a = a.astype(dt)
    return jnp.pad(a, ((0, rows - a.shape[0]), (0, cols - a.shape[1])))


# --------------------------------------------------------------------------- #
# Kernel
# --------------------------------------------------------------------------- #
def _critic_kernel(feature_dim, f_pad, h_pad,
                   obs_ref, act_ref,
                   w_tr_ref, b_tr_ref, ln_w_ref, ln_b_ref,
                   wf_ref, wa_ref, b1_ref,
                   w1b_ref, b1b_ref, w2b_ref, b2b_ref,
                   w1c_ref, w2c_ref, bc_ref,
                   q_ref, acc_ref):
    k = pl.program_id(1)

    @pl.when(k == 0)
    def _():
        acc_ref[...] = jnp.zeros_like(acc_ref)

    # ---- trunk matmul, streamed over repr_dim chunks (f32 accumulation) ----
    acc_ref[...] += jnp.dot(obs_ref[...], w_tr_ref[...],
                            preferred_element_type=jnp.float32)

    @pl.when(k == pl.num_programs(1) - 1)
    def _():
        w_dt = wf_ref.dtype

        # ---- LayerNorm (two-pass, centered variance) + Tanh ----
        h = acc_ref[...] + b_tr_ref[...]
        inv_n = 1.0 / feature_dim
        mean = jnp.sum(h, axis=-1, keepdims=True) * inv_n
        centered = h - mean
        if f_pad != feature_dim:
            col = lax.broadcasted_iota(jnp.int32, (1, f_pad), 1)
            centered = jnp.where(col < feature_dim, centered, 0.0)
        var = jnp.sum(centered * centered, axis=-1, keepdims=True) * inv_n
        hn = centered * lax.rsqrt(var + LN_EPS)
        # ln_w / ln_b pad lanes are zero -> padded lanes become tanh(0) = 0
        h = jnp.tanh(hn * ln_w_ref[...] + ln_b_ref[...]).astype(w_dt)

        # ---- fused first layer of both Q heads ----
        # concat([h, action]) @ W  ==  h @ Wf + action @ Wa ; Q1/Q2 columns fused
        a = act_ref[...]
        x = (jnp.dot(h, wf_ref[...], preferred_element_type=jnp.float32)
             + jnp.dot(a, wa_ref[...], preferred_element_type=jnp.float32)
             + b1_ref[...])
        x = jnp.maximum(x, 0.0).astype(w_dt)
        x1 = x[:, :h_pad]   # Q1 half (128-aligned lane slice)
        x2 = x[:, h_pad:]   # Q2 half

        # ---- second layers (separate MXU matmuls, f32 accumulation) ----
        x1 = jnp.maximum(jnp.dot(x1, w1b_ref[...],
                                 preferred_element_type=jnp.float32) + b1b_ref[...], 0.0)
        x2 = jnp.maximum(jnp.dot(x2, w2b_ref[...],
                                 preferred_element_type=jnp.float32) + b2b_ref[...], 0.0)

        # ---- final N=1 projections: VPU multiply + lane reduce (no MXU waste) ----
        q1 = jnp.sum(x1 * w1c_ref[...], axis=-1, keepdims=True)  # (tile_b, 1) f32
        q2 = jnp.sum(x2 * w2c_ref[...], axis=-1, keepdims=True)

        # lane-dense output block: col 0 = Q1, col 1 = Q2, rest 0 (unmasked stores)
        ocol = lax.broadcasted_iota(jnp.int32, (1, OUT_PAD), 1)
        q = jnp.where(ocol == 0, q1, jnp.where(ocol == 1, q2, 0.0)) + bc_ref[...]
        q_ref[...] = q.astype(q_ref.dtype)


# --------------------------------------------------------------------------- #
# Parameter packing (padding + fusion into kernel layout)
# --------------------------------------------------------------------------- #
def pack_params(p, repr_dim, action_dim, feature_dim, hidden_dim,
                compute_dtype=jnp.float32, tile_r=None):
    A_pad = _round_up(action_dim, 128)
    F_pad = _round_up(feature_dim, 128)
    H_pad = _round_up(hidden_dim, 128)

    # repr_dim chunking: w_tr rows are streamed in (tile_r, F_pad) blocks.
    R0 = _round_up(repr_dim, 128)
    if tile_r is None:
        tile_r = min(R0, 2048)
    tile_r = max(128, _round_up(tile_r, 128))
    R_pad = _round_up(R0, tile_r)

    def pad2(a, r, c):
        return jnp.pad(a, ((0, r - a.shape[0]), (0, c - a.shape[1])))

    def row(v, c):
        v = jnp.ravel(v)
        return jnp.pad(v.reshape(1, -1), ((0, 0), (0, c - v.shape[0])))

    cd = compute_dtype
    packed = {
        # trunk (streamed over rows); pad rows/cols are zero
        "w_tr": pad2(p["trunk_w"], R_pad, F_pad).astype(cd),
        "b_tr": row(p["trunk_b"], F_pad),                       # f32, pad = 0
        "ln_w": row(p["ln_w"], F_pad),
        "ln_b": row(p["ln_b"], F_pad),
        # fused first layer of both heads; concat-Linear split into feat/act parts
        "wf": jnp.concatenate(
            [pad2(p["q1_w0"][:feature_dim], F_pad, H_pad),
             pad2(p["q2_w0"][:feature_dim], F_pad, H_pad)], axis=1).astype(cd),
        "wa": jnp.concatenate(
            [pad2(p["q1_w0"][feature_dim:], A_pad, H_pad),
             pad2(p["q2_w0"][feature_dim:], A_pad, H_pad)], axis=1).astype(cd),
        "b1": jnp.concatenate([row(p["q1_b0"], H_pad), row(p["q2_b0"], H_pad)], axis=1),
        "w1b": pad2(p["q1_w1"], H_pad, H_pad).astype(cd),
        "b1b": row(p["q1_b1"], H_pad),
        "w2b": pad2(p["q2_w1"], H_pad, H_pad).astype(cd),
        "b2b": row(p["q2_b1"], H_pad),
        # final N=1 projections kept as f32 row vectors (VPU reduce in kernel)
        "w1c": row(p["q1_w2"][:, 0], H_pad),
        "w2c": row(p["q2_w2"][:, 0], H_pad),
        "bc": row(jnp.concatenate([p["q1_b2"], p["q2_b2"]]), OUT_PAD),
        "dims": dict(repr_dim=repr_dim, action_dim=action_dim,
                     feature_dim=feature_dim, hidden_dim=hidden_dim,
                     R_pad=R_pad, A_pad=A_pad, F_pad=F_pad, H_pad=H_pad,
                     tile_r=tile_r),
    }
    return packed


# --------------------------------------------------------------------------- #
# Wrapper
# --------------------------------------------------------------------------- #
def critic_forward(obs, action, packed, *, tile_b=None, max_tile_b=256):
    dims = packed["dims"]
    feature_dim = dims["feature_dim"]
    R_pad, A_pad, F_pad, H_pad = (dims["R_pad"], dims["A_pad"],
                                  dims["F_pad"], dims["H_pad"])
    tile_r = dims["tile_r"]
    compute_dtype = packed["w_tr"].dtype
    in_item = jnp.dtype(compute_dtype).itemsize
    sub = _sublane(compute_dtype)

    weights = (packed["w_tr"], packed["b_tr"], packed["ln_w"], packed["ln_b"],
               packed["wf"], packed["wa"], packed["b1"],
               packed["w1b"], packed["b1b"], packed["w2b"], packed["b2b"],
               packed["w1c"], packed["w2c"], packed["bc"])

    # ---- device-aware VMEM budget & tile_b derivation ----
    vmem_cap = _vmem_capacity_bytes()
    budget = int(0.80 * vmem_cap)

    # resident head/LN weights (w_tr is streamed, not resident); budget x2 in
    # case the pipeline still double-buffers constant-index blocks.
    resident_bytes = 2 * sum(int(w.size) * w.dtype.itemsize for w in weights[1:])
    wtr_stream_bytes = 2 * tile_r * F_pad * in_item          # double-buffered w_tr chunk
    slack = 4 << 20

    per_row = (2 * tile_r * in_item          # obs chunk, double-buffered
               + 2 * A_pad * in_item         # action tile, double-buffered
               + 2 * OUT_PAD * 4             # output tile, double-buffered
               + F_pad * 4                   # trunk f32 accumulator scratch
               + 2 * H_pad * (4 + in_item)   # fused first-layer acts (f32 + cast)
               + 2 * H_pad * 4)              # second-layer f32 acts
    avail = budget - resident_bytes - wtr_stream_bytes - slack

    B = obs.shape[0]
    if tile_b is None:
        tile_b = max(sub, avail // per_row) if avail > 0 else sub
        tile_b = min(tile_b, max_tile_b, _round_up(B, sub))
        tile_b = max(sub, tile_b // sub * sub)
        # keep >= 2 batch grid steps so the "parallel" axis can use both v7x cores
        if B > sub and tile_b >= _round_up(B, sub):
            tile_b = max(sub, _round_up(_cdiv(B, 2), sub))
    else:
        tile_b = max(sub, _round_up(tile_b, sub))
    B_pad = _round_up(max(B, tile_b), tile_b)

    obs_p = _prep(obs, B_pad, R_pad, compute_dtype)
    act_p = _prep(action, B_pad, A_pad, compute_dtype)

    num_b = B_pad // tile_b
    num_r = R_pad // tile_r

    row_map = lambda i, k: (i, 0)
    in_specs = ([pl.BlockSpec((tile_b, tile_r), lambda i, k: (i, k)),   # obs (streamed over k)
                 pl.BlockSpec((tile_b, A_pad), row_map),                # action (per batch tile)
                 pl.BlockSpec((tile_r, F_pad), lambda i, k: (k, 0))]    # trunk W (streamed over k)
                + [pl.BlockSpec(w.shape, lambda i, k: (0, 0))           # resident head/LN weights
                   for w in weights[1:]])
    out_specs = pl.BlockSpec((tile_b, OUT_PAD), row_map)

    # cost estimate (advisory)
    flops = 2 * B_pad * (R_pad * F_pad + (F_pad + A_pad) * 2 * H_pad
                         + 2 * H_pad * H_pad + 2 * H_pad)
    weight_bytes = sum(int(w.size) * w.dtype.itemsize for w in weights)
    io_bytes = (int(obs_p.size) + int(act_p.size)) * in_item + B_pad * OUT_PAD * 4
    cost = pl.CostEstimate(flops=int(flops),
                           transcendentals=int(B_pad * F_pad),
                           bytes_accessed=int(weight_bytes + io_bytes))

    usage = resident_bytes + wtr_stream_bytes + per_row * tile_b + slack
    vmem_limit = int(min(0.90 * vmem_cap, max(usage, 32 << 20)))

    kernel = functools.partial(_critic_kernel, feature_dim, F_pad, H_pad)
    q = pl.pallas_call(
        kernel,
        out_shape=jax.ShapeDtypeStruct((B_pad, OUT_PAD), jnp.float32),
        grid=(num_b, num_r),
        in_specs=in_specs,
        out_specs=out_specs,
        scratch_shapes=[pltpu.VMEM((tile_b, F_pad), jnp.float32)],
        compiler_params=pltpu.CompilerParams(
            dimension_semantics=("parallel", "arbitrary"),
            vmem_limit_bytes=vmem_limit),
        cost_estimate=cost,
    )(obs_p, act_p, *weights)

    return q[:B, 0:1], q[:B, 1:2]


# --------------------------------------------------------------------------- #
# Synthetic params + pure-JAX reference (mirrors the PyTorch module)
# --------------------------------------------------------------------------- #
def init_params(key, repr_dim, action_dim, feature_dim, hidden_dim):
    ks = jax.random.split(key, 9)

    def lin(k, fan_in, fan_out, scale=0.1):
        kw, kb = jax.random.split(k)
        w = scale * jax.random.normal(kw, (fan_in, fan_out), jnp.float32)
        b = scale * jax.random.normal(kb, (fan_out,), jnp.float32)
        return w, b

    p = {}
    p["trunk_w"], p["trunk_b"] = lin(ks[0], repr_dim, feature_dim)
    p["ln_w"] = 1.0 + 0.1 * jax.random.normal(ks[1], (feature_dim,), jnp.float32)
    p["ln_b"] = 0.1 * jax.random.normal(ks[2], (feature_dim,), jnp.float32)

    cat = feature_dim + action_dim
    p["q1_w0"], p["q1_b0"] = lin(ks[3], cat, hidden_dim)
    p["q1_w1"], p["q1_b1"] = lin(ks[4], hidden_dim, hidden_dim)
    p["q1_w2"], p["q1_b2"] = lin(ks[5], hidden_dim, 1)
    p["q2_w0"], p["q2_b0"] = lin(ks[6], cat, hidden_dim)
    p["q2_w1"], p["q2_b1"] = lin(ks[7], hidden_dim, hidden_dim)
    p["q2_w2"], p["q2_b2"] = lin(ks[8], hidden_dim, 1)
    return p


def critic_ref(obs, action, p):
    h = obs @ p["trunk_w"] + p["trunk_b"]
    mean = jnp.mean(h, -1, keepdims=True)
    var = jnp.mean((h - mean) ** 2, -1, keepdims=True)
    h = (h - mean) / jnp.sqrt(var + LN_EPS) * p["ln_w"] + p["ln_b"]
    h = jnp.tanh(h)
    ha = jnp.concatenate([h, action], axis=-1)

    def head(w0, b0, w1, b1, w2, b2):
        x = jnp.maximum(ha @ w0 + b0, 0.0)
        x = jnp.maximum(x @ w1 + b1, 0.0)
        return x @ w2 + b2

    q1 = head(p["q1_w0"], p["q1_b0"], p["q1_w1"], p["q1_b1"], p["q1_w2"], p["q1_b2"])
    q2 = head(p["q2_w0"], p["q2_b0"], p["q2_w1"], p["q2_b1"], p["q2_w2"], p["q2_b2"])
    return q1, q2


if __name__ == "__main__":
    B, repr_dim, action_dim, feature_dim, hidden_dim = 32, 64, 4, 32, 32

    key = jax.random.PRNGKey(0)
    k_obs, k_act, k_par = jax.random.split(key, 3)
    obs = jax.random.normal(k_obs, (B, repr_dim), jnp.float32)
    action = jax.random.normal(k_act, (B, action_dim), jnp.float32)
    params = init_params(k_par, repr_dim, action_dim, feature_dim, hidden_dim)

    q1_ref, q2_ref = critic_ref(obs, action, params)

    # f32 path, explicit small tile: exercises a 4-step batch grid + resident weights.
    packed_f32 = pack_params(params, repr_dim, action_dim, feature_dim, hidden_dim,
                             compute_dtype=jnp.float32)
    q1, q2 = critic_forward(obs, action, packed_f32, tile_b=8)
    jax.block_until_ready((q1, q2))
    assert q1.shape == (B, 1) and q2.shape == (B, 1)
    assert jnp.allclose(q1, q1_ref, atol=1e-4, rtol=1e-4)
    assert jnp.allclose(q2, q2_ref, atol=1e-4, rtol=1e-4)

    # f32 path, auto tiling (VMEM-budget derived; >=2 batch tiles for megacore).
    q1a, q2a = critic_forward(obs, action, packed_f32)
    jax.block_until_ready((q1a, q2a))
    assert jnp.allclose(q1a, q1_ref, atol=1e-4, rtol=1e-4)
    assert jnp.allclose(q2a, q2_ref, atol=1e-4, rtol=1e-4)

    # bf16 weights/activations (production mem-bound path); loose sanity check.
    packed_bf16 = pack_params(params, repr_dim, action_dim, feature_dim, hidden_dim,
                              compute_dtype=jnp.bfloat16)
    q1b, q2b = critic_forward(obs, action, packed_bf16)
    jax.block_until_ready((q1b, q2b))
    assert bool(jnp.all(jnp.isfinite(q1b))) and bool(jnp.all(jnp.isfinite(q2b)))
    assert float(jnp.max(jnp.abs(q1b - q1_ref))) < 0.1
    assert float(jnp.max(jnp.abs(q2b - q2_ref))) < 0.1

    print("KERNEL_OK")
</pallas_src>

<mosaic_0001>
module attributes {stable_mosaic.version = 11 : i64} {
  func.func @_critic_kernel(%arg0: i32, %arg1: i32, %arg2: memref<8x128xf32, #tpu.memory_space<vmem>>, %arg3: memref<8x128xf32, #tpu.memory_space<vmem>>, %arg4: memref<128x128xf32, #tpu.memory_space<vmem>>, %arg5: memref<1x128xf32, #tpu.memory_space<vmem>>, %arg6: memref<1x128xf32, #tpu.memory_space<vmem>>, %arg7: memref<1x128xf32, #tpu.memory_space<vmem>>, %arg8: memref<128x256xf32, #tpu.memory_space<vmem>>, %arg9: memref<128x256xf32, #tpu.memory_space<vmem>>, %arg10: memref<1x256xf32, #tpu.memory_space<vmem>>, %arg11: memref<128x128xf32, #tpu.memory_space<vmem>>, %arg12: memref<1x128xf32, #tpu.memory_space<vmem>>, %arg13: memref<128x128xf32, #tpu.memory_space<vmem>>, %arg14: memref<1x128xf32, #tpu.memory_space<vmem>>, %arg15: memref<1x128xf32, #tpu.memory_space<vmem>>, %arg16: memref<1x128xf32, #tpu.memory_space<vmem>>, %arg17: memref<1x128xf32, #tpu.memory_space<vmem>>, %arg18: memref<8x128xf32, #tpu.memory_space<vmem>>, %arg19: memref<8x128xf32, #tpu.memory_space<vmem>>) attributes {dimension_semantics = [#tpu.dimension_semantics<parallel>, #tpu.dimension_semantics<arbitrary>], iteration_bounds = array<i64: 4, 1>, scalar_prefetch = 0 : i64, scratch_operands = 1 : i64, tpu.core_type = #tpu.core_type<tc>, window_params = [{transform_indices = @transform_0, window_bounds = array<i64: 8, 128>}, {transform_indices = @transform_1, window_bounds = array<i64: 8, 128>}, {transform_indices = @transform_2, window_bounds = array<i64: 128, 128>}, {pipeline_mode = #tpu.pipeline_mode<synchronous>, transform_indices = @transform_3, window_bounds = array<i64: 1, 128>}, {pipeline_mode = #tpu.pipeline_mode<synchronous>, transform_indices = @transform_4, window_bounds = array<i64: 1, 128>}, {pipeline_mode = #tpu.pipeline_mode<synchronous>, transform_indices = @transform_5, window_bounds = array<i64: 1, 128>}, {pipeline_mode = #tpu.pipeline_mode<synchronous>, transform_indices = @transform_6, window_bounds = array<i64: 128, 256>}, {pipeline_mode = #tpu.pipeline_mode<synchronous>, transform_indices = @transform_7, window_bounds = array<i64: 128, 256>}, {pipeline_mode = #tpu.pipeline_mode<synchronous>, transform_indices = @transform_8, window_bounds = array<i64: 1, 256>}, {pipeline_mode = #tpu.pipeline_mode<synchronous>, transform_indices = @transform_9, window_bounds = array<i64: 128, 128>}, {pipeline_mode = #tpu.pipeline_mode<synchronous>, transform_indices = @transform_10, window_bounds = array<i64: 1, 128>}, {pipeline_mode = #tpu.pipeline_mode<synchronous>, transform_indices = @transform_11, window_bounds = array<i64: 128, 128>}, {pipeline_mode = #tpu.pipeline_mode<synchronous>, transform_indices = @transform_12, window_bounds = array<i64: 1, 128>}, {pipeline_mode = #tpu.pipeline_mode<synchronous>, transform_indices = @transform_13, window_bounds = array<i64: 1, 128>}, {pipeline_mode = #tpu.pipeline_mode<synchronous>, transform_indices = @transform_14, window_bounds = array<i64: 1, 128>}, {pipeline_mode = #tpu.pipeline_mode<synchronous>, transform_indices = @transform_15, window_bounds = array<i64: 1, 128>}, {transform_indices = @transform_16, window_bounds = array<i64: 8, 128>}]} {
    %c0_i32 = arith.constant 0 : i32
    %0 = arith.cmpi eq, %arg1, %c0_i32 : i32
    %1 = arith.extui %0 : i1 to i32
    %c0_i32_0 = arith.constant 0 : i32
    %2 = arith.cmpi ne, %1, %c0_i32_0 : i32
    scf.if %2 {
      %cst_10 = arith.constant 0.000000e+00 : f32
      %12 = vector.broadcast %cst_10 : f32 to vector<8x128xf32>
      %c0_11 = arith.constant 0 : index
      %c0_12 = arith.constant 0 : index
      %13 = vector.load %arg19[%c0_11, %c0_12] : memref<8x128xf32, #tpu.memory_space<vmem>>, vector<8x128xf32>
      tpu.vector_store %arg19[%c0_11, %c0_12], %12 {strides = array<i32>} : memref<8x128xf32, #tpu.memory_space<vmem>>, vector<8x128xf32>,
    } else {
    }
    %c0 = arith.constant 0 : index
    %c0_1 = arith.constant 0 : index
    %3 = vector.load %arg19[%c0, %c0_1] : memref<8x128xf32, #tpu.memory_space<vmem>>, vector<8x128xf32>
    %c0_2 = arith.constant 0 : index
    %c0_3 = arith.constant 0 : index
    %4 = vector.load %arg2[%c0_2, %c0_3] : memref<8x128xf32, #tpu.memory_space<vmem>>, vector<8x128xf32>
    %c0_4 = arith.constant 0 : index
    %c0_5 = arith.constant 0 : index
    %5 = vector.load %arg4[%c0_4, %c0_5] : memref<128x128xf32, #tpu.memory_space<vmem>>, vector<128x128xf32>
    %cst = arith.constant dense<0.000000e+00> : vector<8x128xf32>
    %6 = tpu.matmul %4, %5, %cst {dimension_numbers = #tpu.dot_dimension_numbers<[1], [0], [0], [1], [0, 0, 1, 1], [], []>} : vector<8x128xf32>, vector<128x128xf32>, vector<8x128xf32> -> vector<8x128xf32>
    %7 = arith.addf %3, %6 : vector<8x128xf32>
    %c0_6 = arith.constant 0 : index
    %c0_7 = arith.constant 0 : index
    %8 = vector.load %arg19[%c0_6, %c0_7] : memref<8x128xf32, #tpu.memory_space<vmem>>, vector<8x128xf32>
    tpu.vector_store %arg19[%c0_6, %c0_7], %7 {strides = array<i32>} : memref<8x128xf32, #tpu.memory_space<vmem>>, vector<8x128xf32>,
    %c0_i32_8 = arith.constant 0 : i32
    %9 = arith.cmpi eq, %arg1, %c0_i32_8 : i32
    %10 = arith.extui %9 : i1 to i32
    %c0_i32_9 = arith.constant 0 : i32
    %11 = arith.cmpi ne, %10, %c0_i32_9 : i32
    scf.if %11 {
      %c0_10 = arith.constant 0 : index
      %c0_11 = arith.constant 0 : index
      %12 = vector.load %arg19[%c0_10, %c0_11] : memref<8x128xf32, #tpu.memory_space<vmem>>, vector<8x128xf32>
      %c0_12 = arith.constant 0 : index
      %c0_13 = arith.constant 0 : index
      %13 = vector.load %arg5[%c0_12, %c0_13] : memref<1x128xf32, #tpu.memory_space<vmem>>, vector<1x128xf32>
      %14 = vector.broadcast %13 : vector<1x128xf32> to vector<8x128xf32>
      %15 = arith.addf %12, %14 : vector<8x128xf32>
      %cst_14 = arith.constant dense<0.000000e+00> : vector<8xf32>
      %16 = vector.multi_reduction <add>, %15, %cst_14 [1] : vector<8x128xf32> to vector<8xf32>
      %17 = vector.shape_cast %16 : vector<8xf32> to vector<8x1xf32>
      %cst_15 = arith.constant 3.125000e-02 : f32
      %18 = vector.broadcast %cst_15 : f32 to vector<8x1xf32>
      %19 = arith.mulf %17, %18 : vector<8x1xf32>
      %20 = vector.broadcast %19 : vector<8x1xf32> to vector<8x128xf32>
      %21 = arith.subf %15, %20 : vector<8x128xf32>
      %22 = tpu.iota {dimensions = array<i32: 1>} : vector<1x128xi32>
      %c32_i32 = arith.constant 32 : i32
      %23 = vector.broadcast %c32_i32 : i32 to vector<1x128xi32>
      %24 = arith.cmpi slt, %22, %23 : vector<1x128xi32>
      %cst_16 = arith.constant 0.000000e+00 : f32
      %25 = vector.shape_cast %24 : vector<1x128xi1> to vector<1x128xi1>
      %26 = vector.broadcast %25 : vector<1x128xi1> to vector<8x128xi1>
      %27 = vector.broadcast %cst_16 : f32 to vector<8x128xf32>
      %28 = arith.select %26, %21, %27 : vector<8x128xi1>, vector<8x128xf32>
      %29 = arith.mulf %28, %28 : vector<8x128xf32>
      %cst_17 = arith.constant dense<0.000000e+00> : vector<8xf32>
      %30 = vector.multi_reduction <add>, %29, %cst_17 [1] : vector<8x128xf32> to vector<8xf32>
      %31 = vector.shape_cast %30 : vector<8xf32> to vector<8x1xf32>
      %cst_18 = arith.constant 3.125000e-02 : f32
      %32 = vector.broadcast %cst_18 : f32 to vector<8x1xf32>
      %33 = arith.mulf %31, %32 : vector<8x1xf32>
      %cst_19 = arith.constant 9.99999974E-6 : f32
      %34 = vector.broadcast %cst_19 : f32 to vector<8x1xf32>
      %35 = arith.addf %33, %34 : vector<8x1xf32>
      %36 = math.rsqrt %35 : vector<8x1xf32>
      %37 = vector.broadcast %36 : vector<8x1xf32> to vector<8x128xf32>
      %38 = arith.mulf %28, %37 : vector<8x128xf32>
      %c0_20 = arith.constant 0 : index
      %c0_21 = arith.constant 0 : index
      %39 = vector.load %arg6[%c0_20, %c0_21] : memref<1x128xf32, #tpu.memory_space<vmem>>, vector<1x128xf32>
      %40 = vector.broadcast %39 : vector<1x128xf32> to vector<8x128xf32>
      %41 = arith.mulf %38, %40 : vector<8x128xf32>
      %c0_22 = arith.constant 0 : index
      %c0_23 = arith.constant 0 : index
      %42 = vector.load %arg7[%c0_22, %c0_23] : memref<1x128xf32, #tpu.memory_space<vmem>>, vector<1x128xf32>
      %43 = vector.broadcast %42 : vector<1x128xf32> to vector<8x128xf32>
      %44 = arith.addf %41, %43 : vector<8x128xf32>
      %45 = math.tanh %44 : vector<8x128xf32>
      %c0_24 = arith.constant 0 : index
      %c0_25 = arith.constant 0 : index
      %46 = vector.load %arg3[%c0_24, %c0_25] : memref<8x128xf32, #tpu.memory_space<vmem>>, vector<8x128xf32>
      %c0_26 = arith.constant 0 : index
      %c0_27 = arith.constant 0 : index
      %47 = vector.load %arg8[%c0_26, %c0_27] : memref<128x256xf32, #tpu.memory_space<vmem>>, vector<128x256xf32>
      %cst_28 = arith.constant dense<0.000000e+00> : vector<8x256xf32>
      %48 = tpu.matmul %45, %47, %cst_28 {dimension_numbers = #tpu.dot_dimension_numbers<[1], [0], [0], [1], [0, 0, 1, 1], [], []>} : vector<8x128xf32>, vector<128x256xf32>, vector<8x256xf32> -> vector<8x256xf32>
      %c0_29 = arith.constant 0 : index
      %c0_30 = arith.constant 0 : index
      %49 = vector.load %arg9[%c0_29, %c0_30] : memref<128x256xf32, #tpu.memory_space<vmem>>, vector<128x256xf32>
      %cst_31 = arith.constant dense<0.000000e+00> : vector<8x256xf32>
      %50 = tpu.matmul %46, %49, %cst_31 {dimension_numbers = #tpu.dot_dimension_numbers<[1], [0], [0], [1], [0, 0, 1, 1], [], []>} : vector<8x128xf32>, vector<128x256xf32>, vector<8x256xf32> -> vector<8x256xf32>
      %51 = arith.addf %48, %50 : vector<8x256xf32>
      %c0_32 = arith.constant 0 : index
      %c0_33 = arith.constant 0 : index
      %52 = vector.load %arg10[%c0_32, %c0_33] : memref<1x256xf32, #tpu.memory_space<vmem>>, vector<1x256xf32>
      %53 = vector.broadcast %52 : vector<1x256xf32> to vector<8x256xf32>
      %54 = arith.addf %51, %53 : vector<8x256xf32>
      %cst_34 = arith.constant 0.000000e+00 : f32
      %55 = vector.broadcast %cst_34 : f32 to vector<8x256xf32>
      %56 = arith.maximumf %54, %55 : vector<8x256xf32>
      %57 = vector.extract_strided_slice %56 {offsets = [0, 0], sizes = [8, 128], strides = [1, 1]} : vector<8x256xf32> to vector<8x128xf32>
      %58 = vector.extract_strided_slice %56 {offsets = [0, 128], sizes = [8, 128], strides = [1, 1]} : vector<8x256xf32> to vector<8x128xf32>
      %c0_35 = arith.constant 0 : index
      %c0_36 = arith.constant 0 : index
      %59 = vector.load %arg11[%c0_35, %c0_36] : memref<128x128xf32, #tpu.memory_space<vmem>>, vector<128x128xf32>
      %cst_37 = arith.constant dense<0.000000e+00> : vector<8x128xf32>
      %60 = tpu.matmul %57, %59, %cst_37 {dimension_numbers = #tpu.dot_dimension_numbers<[1], [0], [0], [1], [0, 0, 1, 1], [], []>} : vector<8x128xf32>, vector<128x128xf32>, vector<8x128xf32> -> vector<8x128xf32>
      %c0_38 = arith.constant 0 : index
      %c0_39 = arith.constant 0 : index
      %61 = vector.load %arg12[%c0_38, %c0_39] : memref<1x128xf32, #tpu.memory_space<vmem>>, vector<1x128xf32>
      %62 = vector.broadcast %61 : vector<1x128xf32> to vector<8x128xf32>
      %63 = arith.addf %60, %62 : vector<8x128xf32>
      %cst_40 = arith.constant 0.000000e+00 : f32
      %64 = vector.broadcast %cst_40 : f32 to vector<8x128xf32>
      %65 = arith.maximumf %63, %64 : vector<8x128xf32>
      %c0_41 = arith.constant 0 : index
      %c0_42 = arith.constant 0 : index
      %66 = vector.load %arg13[%c0_41, %c0_42] : memref<128x128xf32, #tpu.memory_space<vmem>>, vector<128x128xf32>
      %cst_43 = arith.constant dense<0.000000e+00> : vector<8x128xf32>
      %67 = tpu.matmul %58, %66, %cst_43 {dimension_numbers = #tpu.dot_dimension_numbers<[1], [0], [0], [1], [0, 0, 1, 1], [], []>} : vector<8x128xf32>, vector<128x128xf32>, vector<8x128xf32> -> vector<8x128xf32>
      %c0_44 = arith.constant 0 : index
      %c0_45 = arith.constant 0 : index
      %68 = vector.load %arg14[%c0_44, %c0_45] : memref<1x128xf32, #tpu.memory_space<vmem>>, vector<1x128xf32>
      %69 = vector.broadcast %68 : vector<1x128xf32> to vector<8x128xf32>
      %70 = arith.addf %67, %69 : vector<8x128xf32>
      %cst_46 = arith.constant 0.000000e+00 : f32
      %71 = vector.broadcast %cst_46 : f32 to vector<8x128xf32>
      %72 = arith.maximumf %70, %71 : vector<8x128xf32>
      %c0_47 = arith.constant 0 : index
      %c0_48 = arith.constant 0 : index
      %73 = vector.load %arg15[%c0_47, %c0_48] : memref<1x128xf32, #tpu.memory_space<vmem>>, vector<1x128xf32>
      %74 = vector.broadcast %73 : vector<1x128xf32> to vector<8x128xf32>
      %75 = arith.mulf %65, %74 : vector<8x128xf32>
      %cst_49 = arith.constant dense<0.000000e+00> : vector<8xf32>
      %76 = vector.multi_reduction <add>, %75, %cst_49 [1] : vector<8x128xf32> to vector<8xf32>
      %77 = vector.shape_cast %76 : vector<8xf32> to vector<8x1xf32>
      %c0_50 = arith.constant 0 : index
      %c0_51 = arith.constant 0 : index
      %78 = vector.load %arg16[%c0_50, %c0_51] : memref<1x128xf32, #tpu.memory_space<vmem>>, vector<1x128xf32>
      %79 = vector.broadcast %78 : vector<1x128xf32> to vector<8x128xf32>
      %80 = arith.mulf %72, %79 : vector<8x128xf32>
      %cst_52 = arith.constant dense<0.000000e+00> : vector<8xf32>
      %81 = vector.multi_reduction <add>, %80, %cst_52 [1] : vector<8x128xf32> to vector<8xf32>
      %82 = vector.shape_cast %81 : vector<8xf32> to vector<8x1xf32>
      %83 = tpu.iota {dimensions = array<i32: 1>} : vector<1x128xi32>
      %c0_i32_53 = arith.constant 0 : i32
      %84 = vector.broadcast %c0_i32_53 : i32 to vector<1x128xi32>
      %85 = arith.cmpi eq, %83, %84 : vector<1x128xi32>
      %c1_i32 = arith.constant 1 : i32
      %86 = vector.broadcast %c1_i32 : i32 to vector<1x128xi32>
      %87 = arith.cmpi eq, %83, %86 : vector<1x128xi32>
      %cst_54 = arith.constant 0.000000e+00 : f32
      %88 = vector.shape_cast %87 : vector<1x128xi1> to vector<1x128xi1>
      %89 = vector.broadcast %88 : vector<1x128xi1> to vector<8x128xi1>
      %90 = vector.shape_cast %82 : vector<8x1xf32> to vector<8x1xf32>
      %91 = vector.broadcast %90 : vector<8x1xf32> to vector<8x128xf32>
      %92 = vector.broadcast %cst_54 : f32 to vector<8x128xf32>
      %93 = arith.select %89, %91, %92 : vector<8x128xi1>, vector<8x128xf32>
      %94 = vector.shape_cast %85 : vector<1x128xi1> to vector<1x128xi1>
      %95 = vector.broadcast %94 : vector<1x128xi1> to vector<8x128xi1>
      %96 = vector.shape_cast %77 : vector<8x1xf32> to vector<8x1xf32>
      %97 = vector.broadcast %96 : vector<8x1xf32> to vector<8x128xf32>
      %98 = arith.select %95, %97, %93 : vector<8x128xi1>, vector<8x128xf32>
      %c0_55 = arith.constant 0 : index
      %c0_56 = arith.constant 0 : index
      %99 = vector.load %arg17[%c0_55, %c0_56] : memref<1x128xf32, #tpu.memory_space<vmem>>, vector<1x128xf32>
      %100 = vector.broadcast %99 : vector<1x128xf32> to vector<8x128xf32>
      %101 = arith.addf %98, %100 : vector<8x128xf32>
      %c0_57 = arith.constant 0 : index
      %c0_58 = arith.constant 0 : index
      %102 = vector.load %arg18[%c0_57, %c0_58] : memref<8x128xf32, #tpu.memory_space<vmem>>, vector<8x128xf32>
      tpu.vector_store %arg18[%c0_57, %c0_58], %101 {strides = array<i32>} : memref<8x128xf32, #tpu.memory_space<vmem>>, vector<8x128xf32>,
    } else {
    }
    return
  }
  func.func @transform_0(%arg0: i32, %arg1: i32) -> (i32, i32) {
    %c0_i32 = arith.constant 0 : i32
    return %arg0, %arg1 : i32, i32
  }
  func.func @transform_1(%arg0: i32, %arg1: i32) -> (i32, i32) {
    %c0_i32 = arith.constant 0 : i32
    %c0_i32_0 = arith.constant 0 : i32
    return %arg0, %c0_i32 : i32, i32
  }
  func.func @transform_2(%arg0: i32, %arg1: i32) -> (i32, i32) {
    %c0_i32 = arith.constant 0 : i32
    %c0_i32_0 = arith.constant 0 : i32
    return %arg1, %c0_i32 : i32, i32
  }
  func.func @transform_3(%arg0: i32, %arg1: i32) -> (i32, i32) {
    %c0_i32 = arith.constant 0 : i32
    %c0_i32_0 = arith.constant 0 : i32
    %c0_i32_1 = arith.constant 0 : i32
    return %c0_i32, %c0_i32_0 : i32, i32
  }
  func.func @transform_4(%arg0: i32, %arg1: i32) -> (i32, i32) {
    %c0_i32 = arith.constant 0 : i32
    %c0_i32_0 = arith.constant 0 : i32
    %c0_i32_1 = arith.constant 0 : i32
    return %c0_i32, %c0_i32_0 : i32, i32
  }
  func.func @transform_5(%arg0: i32, %arg1: i32) -> (i32, i32) {
    %c0_i32 = arith.constant 0 : i32
    %c0_i32_0 = arith.constant 0 : i32
    %c0_i32_1 = arith.constant 0 : i32
    return %c0_i32, %c0_i32_0 : i32, i32
  }
  func.func @transform_6(%arg0: i32, %arg1: i32) -> (i32, i32) {
    %c0_i32 = arith.constant 0 : i32
    %c0_i32_0 = arith.constant 0 : i32
    %c0_i32_1 = arith.constant 0 : i32
    return %c0_i32, %c0_i32_0 : i32, i32
  }
  func.func @transform_7(%arg0: i32, %arg1: i32) -> (i32, i32) {
    %c0_i32 = arith.constant 0 : i32
    %c0_i32_0 = arith.constant 0 : i32
    %c0_i32_1 = arith.constant 0 : i32
    return %c0_i32, %c0_i32_0 : i32, i32
  }
  func.func @transform_8(%arg0: i32, %arg1: i32) -> (i32, i32) {
    %c0_i32 = arith.constant 0 : i32
    %c0_i32_0 = arith.constant 0 : i32
    %c0_i32_1 = arith.constant 0 : i32
    return %c0_i32, %c0_i32_0 : i32, i32
  }
  func.func @transform_9(%arg0: i32, %arg1: i32) -> (i32, i32) {
    %c0_i32 = arith.constant 0 : i32
    %c0_i32_0 = arith.constant 0 : i32
    %c0_i32_1 = arith.constant 0 : i32
    return %c0_i32, %c0_i32_0 : i32, i32
  }
  func.func @transform_10(%arg0: i32, %arg1: i32) -> (i32, i32) {
    %c0_i32 = arith.constant 0 : i32
    %c0_i32_0 = arith.constant 0 : i32
    %c0_i32_1 = arith.constant 0 : i32
    return %c0_i32, %c0_i32_0 : i32, i32
  }
  func.func @transform_11(%arg0: i32, %arg1: i32) -> (i32, i32) {
    %c0_i32 = arith.constant 0 : i32
    %c0_i32_0 = arith.constant 0 : i32
    %c0_i32_1 = arith.constant 0 : i32
    return %c0_i32, %c0_i32_0 : i32, i32
  }
  func.func @transform_12(%arg0: i32, %arg1: i32) -> (i32, i32) {
    %c0_i32 = arith.constant 0 : i32
    %c0_i32_0 = arith.constant 0 : i32
    %c0_i32_1 = arith.constant 0 : i32
    return %c0_i32, %c0_i32_0 : i32, i32
  }
  func.func @transform_13(%arg0: i32, %arg1: i32) -> (i32, i32) {
    %c0_i32 = arith.constant 0 : i32
    %c0_i32_0 = arith.constant 0 : i32
    %c0_i32_1 = arith.constant 0 : i32
    return %c0_i32, %c0_i32_0 : i32, i32
  }
  func.func @transform_14(%arg0: i32, %arg1: i32) -> (i32, i32) {
    %c0_i32 = arith.constant 0 : i32
    %c0_i32_0 = arith.constant 0 : i32
    %c0_i32_1 = arith.constant 0 : i32
    return %c0_i32, %c0_i32_0 : i32, i32
  }
  func.func @transform_15(%arg0: i32, %arg1: i32) -> (i32, i32) {
    %c0_i32 = arith.constant 0 : i32
    %c0_i32_0 = arith.constant 0 : i32
    %c0_i32_1 = arith.constant 0 : i32
    return %c0_i32, %c0_i32_0 : i32, i32
  }
  func.func @transform_16(%arg0: i32, %arg1: i32) -> (i32, i32) {
    %c0_i32 = arith.constant 0 : i32
    %c0_i32_0 = arith.constant 0 : i32
    return %arg0, %c0_i32 : i32, i32
  }
}

</mosaic_0001>

<llo_original>
// kernel: tpu_custom_call.1
$region0: #{tpu_custom_call.1}
  #allocation0 [shape = 'u32[]', space=smem, size = 0x4, offset = 0x4, fixed_abs, tag = 'smem constant byte address 0x4 - core index']
  #allocation1 [shape = 'u32[144,128]{1,0:T(1,128)}', space=vmem, size = 0x12000, scoped, tag = 'internal scratch']
  #allocation2 [shape = 'f32[8,128]{1,0:T(8,128)}', space=vmem, size = 0x1000, scoped, tag = 'scratch operand']
  %s0 = inlined_call_operand.hbm [shape: f32[32,128], index: 0, kind: input, shape index: {}]
  %s1 = inlined_call_operand.hbm [shape: f32[32,128], index: 1, kind: input, shape index: {}]
  %s2 = inlined_call_operand.hbm [shape: f32[128,128], index: 2, kind: input, shape index: {}]
  %s3 = inlined_call_operand.vmem [shape: f32[1,128], index: 3, kind: input, shape index: {}]
  %s4 = inlined_call_operand.vmem [shape: f32[1,128], index: 4, kind: input, shape index: {}]
  %s5 = inlined_call_operand.vmem [shape: f32[1,128], index: 5, kind: input, shape index: {}]
  %s6 = inlined_call_operand.hbm [shape: f32[128,256], index: 6, kind: input, shape index: {}]
  %s7 = inlined_call_operand.hbm [shape: f32[128,256], index: 7, kind: input, shape index: {}]
  %s8 = inlined_call_operand.vmem [shape: f32[1,256], index: 8, kind: input, shape index: {}]
  %s9 = inlined_call_operand.hbm [shape: f32[128,128], index: 9, kind: input, shape index: {}]
  %s10 = inlined_call_operand.vmem [shape: f32[1,128], index: 10, kind: input, shape index: {}]
  %s11 = inlined_call_operand.hbm [shape: f32[128,128], index: 11, kind: input, shape index: {}]
  %s12 = inlined_call_operand.vmem [shape: f32[1,128], index: 12, kind: input, shape index: {}]
  %s13 = inlined_call_operand.vmem [shape: f32[1,128], index: 13, kind: input, shape index: {}]
  %s14 = inlined_call_operand.vmem [shape: f32[1,128], index: 14, kind: input, shape index: {}]
  %s15 = inlined_call_operand.vmem [shape: f32[1,128], index: 15, kind: input, shape index: {}]
  %s16 = inlined_call_operand.hbm [shape: f32[32,128], index: 16, kind: output, shape index: {}]
  %s17 = sld [smem:[#allocation0]]
  $region133: #{tpu_custom_call.1} parent=0
    _
  %s19 = ssub.s32 1, %s17
  %s20 = scalar_select 0, %s19, %s17
  $region1: #{tpu_custom_call.1} parent=0
    #allocation3 [shape = 'u8[8192]{0}', space=vmem, size = 0x2000, scoped, tag = 'input window, operand 0']
    #allocation4 [shape = 's32[2]{0}', space=sflag, size = 0x8, scoped, tag = 'scoped memory for tpu_custom_call.1']
    #allocation5 [shape = 's32[2]{0}', space=sflag, size = 0x8, scoped, tag = 'scoped memory for tpu_custom_call.1']
    #allocation6 [shape = 'u8[8192]{0}', space=vmem, size = 0x2000, scoped, tag = 'input window, operand 1']
    #allocation7 [shape = 's32[2]{0}', space=sflag, size = 0x8, scoped, tag = 'scoped memory for tpu_custom_call.1']
    #allocation8 [shape = 'u8[65536]{0}', space=vmem, size = 0x10000, scoped, tag = 'input window, operand 2, single buffered']
    #allocation9 [shape = 'u8[131072]{0}', space=vmem, size = 0x20000, scoped, tag = 'input window, operand 6, single buffered']
    #allocation10 [shape = 's32[1]{0}', space=sflag, size = 0x4, scoped, tag = 'scoped memory for tpu_custom_call.1']
    #allocation11 [shape = 'u8[131072]{0}', space=vmem, size = 0x20000, scoped, tag = 'input window, operand 7, single buffered']
    #allocation12 [shape = 'u8[65536]{0}', space=vmem, size = 0x10000, scoped, tag = 'input window, operand 9, single buffered']
    #allocation13 [shape = 's32[1]{0}', space=sflag, size = 0x4, scoped, tag = 'scoped memory for tpu_custom_call.1']
    #allocation14 [shape = 'u8[65536]{0}', space=vmem, size = 0x10000, scoped, tag = 'input window, operand 11, single buffered']
    #allocation15 [shape = 'u8[8192]{0}', space=vmem, size = 0x2000, scoped, tag = 'output window, operand 0']
    %21 = vsyncpa [#allocation4], 0
    %s22 = scalar_lea.sflag [#allocation4], 1
    %23 = vsyncpa %s22, 0
    %24 = vsyncpa [#allocation7], 0
    %s25 = scalar_lea.sflag [#allocation7], 1
    %26 = vsyncpa %s25, 0
    %27 = vsyncpa [#allocation10], 0
    %28 = vsyncpa [#allocation13], 0
    %29 = vsyncpa [#allocation5], 0
    %s30 = scalar_lea.sflag [#allocation5], 1
    %31 = vsyncpa %s30, 0
    loop: start=0, step=1, limit=6
    $region2: #{tpu_custom_call.1} parent=1 // loop_pre_header
      _
    $region3: #{tpu_custom_call.1} parent=1 // loop_header
      %s33 = sphi 0, %s37
      %p34 = scmp.ge.s32.totalorder %s33, 6
      %s40 = sphi 0, %s52
      %s41 = sphi 0, %s48
      %s42 = sphi 0, %s40
      %s43 = sphi 0, %s41
      %s44 = sphi 0, %s42
      %s45 = sphi 0, %s43
      %s57 = sphi 0, %s59
      %s60 = sphi 0, %s57
      %s61 = sphi 0, %s60
      %s77 = sphi 0, %s61
      %s83 = sphi 0, %s85
      %s86 = sphi 0, %s83
      %s87 = sphi 0, %s86
      %s103 = sphi 0, %s87
      %s109 = sphi 0, %s111
      %s112 = sphi 0, %s109
      %s113 = sphi 0, %s112
      %s129 = sphi 0, %s113
      %s133 = sphi 0, %s133
      %s135 = sphi 0, %s133
      %s136 = sphi 0, %s135
      %s150 = sphi 0, %s136
      %s154 = sphi 0, %s154
      %s156 = sphi 0, %s154
      %s157 = sphi 0, %s156
      %s171 = sphi 0, %s157
      %s175 = sphi 0, %s175
      %s177 = sphi 0, %s175
      %s178 = sphi 0, %s177
      %s192 = sphi 0, %s178
      %s196 = sphi 0, %s196
      %s198 = sphi 0, %s196
      %s199 = sphi 0, %s198
      %s213 = sphi 0, %s199
      %s217 = sphi 0, %s217
      %s219 = sphi 0, %s217
      %s220 = sphi 0, %s219
      %s234 = sphi 0, %s220
      %s238 = sphi 0, %s238
      %s240 = sphi 0, %s238
      %s241 = sphi 0, %s240
      %s255 = sphi 0, %s241
      %s259 = sphi 0, %s259
      %s261 = sphi 0, %s259
      %s262 = sphi 0, %s261
      %s276 = sphi 0, %s262
      %s280 = sphi 0, %s280
      %s282 = sphi 0, %s280
      %s283 = sphi 0, %s282
      %s297 = sphi 0, %s283
      %s301 = sphi 0, %s301
      %s303 = sphi 0, %s301
      %s304 = sphi 0, %s303
      %s318 = sphi 0, %s304
      %s322 = sphi 0, %s322
      %s324 = sphi 0, %s322
      %s325 = sphi 0, %s324
      %s339 = sphi 0, %s325
      %s343 = sphi 0, %s343
      %s345 = sphi 0, %s343
      %s346 = sphi 0, %s345
      %s360 = sphi 0, %s346
      %s364 = sphi 0, %s364
      %s366 = sphi 0, %s364
      %s367 = sphi 0, %s366
      %s381 = sphi 0, %s367
      %s385 = sphi 0, %s385
      %s387 = sphi 0, %s385
      %s388 = sphi 0, %s387
      %s402 = sphi 0, %s388
      %s408 = sphi 0, %s410
      %s411 = sphi 0, %s408
      %s412 = sphi 0, %s411
      %s428 = sphi 0, %s412
    $region4: #{tpu_custom_call.1} parent=1 // loop_header_branch
      %36 = sbr.rel (%p34) target = $region8
    $region5: #{tpu_custom_call.1} parent=1 // loop_body
      %s38 = ssub.s32 %s33, 1
      %s39 = ssub.s32 %s33, 2
      %s46 = sadd.s32 1, %s41
      %p47 = scmp.ge.s32.totalorder %s46, 1
      %s48 = scalar_select %p47, 0, %s46
      %s49 = sadd.s32 1, %s40
      %s50 = scalar_select %p47, %s49, %s40
      %p51 = scmp.ge.s32.totalorder %s50, 4
      %s52 = scalar_select %p51, 0, %s50
      %s53 = ssub.s32 %s40, %s52
      %s54 = ssub.s32 %s41, %s48
      %s55 = sor.u32 %s53, %s54
      %p56 = scmp.eq.s32.totalorder %s55, 0
      %s58 = sadd.s32 %s57, 1
      %s59 = scalar_select %p56, %s57, %s58
      %p62 = pneg %p56
      %p63 = scmp.eq.s32.totalorder %s33, 3
      %p64 = por %p62, %p63
      %p65 = scmp.ne.s32.totalorder %s57, %s60
      %p66 = scmp.eq.s32.totalorder %s33, 0
      %p67 = por %p65, %p66
      %p68 = scmp.ne.s32.totalorder %s57, %s60
      %p69 = scmp.eq.s32.totalorder %s38, 3
      %p70 = por %p68, %p69
      %p71 = scmp.ne.s32.totalorder %s60, %s61
      %p72 = scmp.eq.s32.totalorder %s38, 0
      %p73 = por %p71, %p72
      %p74 = scmp.ne.s32.totalorder %s60, %s61
      %p75 = scmp.eq.s32.totalorder %s39, 3
      %p76 = por %p74, %p75
      %p78 = scmp.ne.s32.totalorder %s61, %s77
      %p79 = scmp.eq.s32.totalorder %s39, 0
      %p80 = por %p78, %p79
      %s81 = ssub.s32 %s40, %s52
      %p82 = scmp.eq.s32.totalorder %s81, 0
      %s84 = sadd.s32 %s83, 1
      %s85 = scalar_select %p82, %s83, %s84
      %p88 = pneg %p82
      %p89 = scmp.eq.s32.totalorder %s33, 3
      %p90 = por %p88, %p89
      %p91 = scmp.ne.s32.totalorder %s83, %s86
      %p92 = scmp.eq.s32.totalorder %s33, 0
      %p93 = por %p91, %p92
      %p94 = scmp.ne.s32.totalorder %s83, %s86
      %p95 = scmp.eq.s32.totalorder %s38, 3
      %p96 = por %p94, %p95
      %p97 = scmp.ne.s32.totalorder %s86, %s87
      %p98 = scmp.eq.s32.totalorder %s38, 0
      %p99 = por %p97, %p98
      %p100 = scmp.ne.s32.totalorder %s86, %s87
      %p101 = scmp.eq.s32.totalorder %s39, 3
      %p102 = por %p100, %p101
      %p104 = scmp.ne.s32.totalorder %s87, %s103
      %p105 = scmp.eq.s32.totalorder %s39, 0
      %p106 = por %p104, %p105
      %s107 = ssub.s32 %s41, %s48
      %p108 = scmp.eq.s32.totalorder %s107, 0
      %s110 = sadd.s32 %s109, 1
      %s111 = scalar_select %p108, %s109, %s110
      %p114 = pneg %p108
      %p115 = scmp.eq.s32.totalorder %s33, 3
      %p116 = por %p114, %p115
      %p117 = scmp.ne.s32.totalorder %s109, %s112
      %p118 = scmp.eq.s32.totalorder %s33, 0
      %p119 = por %p117, %p118
      %p120 = scmp.ne.s32.totalorder %s109, %s112
      %p121 = scmp.eq.s32.totalorder %s38, 3
      %p122 = por %p120, %p121
      %p123 = scmp.ne.s32.totalorder %s112, %s113
      %p124 = scmp.eq.s32.totalorder %s38, 0
      %p125 = por %p123, %p124
      %p126 = scmp.ne.s32.totalorder %s112, %s113
      %p127 = scmp.eq.s32.totalorder %s39, 3
      %p128 = por %p126, %p127
      %p130 = scmp.ne.s32.totalorder %s113, %s129
      %p131 = scmp.eq.s32.totalorder %s39, 0
      %p132 = por %p130, %p131
      %s134 = sadd.s32 %s133, 1
      %p137 = scmp.eq.s32.totalorder %s33, 3
      %p138 = scmp.ne.s32.totalorder %s133, %s135
      %p139 = scmp.eq.s32.totalorder %s33, 0
      %p140 = por %p138, %p139
      %p141 = scmp.ne.s32.totalorder %s133, %s135
      %p142 = scmp.eq.s32.totalorder %s38, 3
      %p143 = por %p141, %p142
      %p144 = scmp.ne.s32.totalorder %s135, %s136
      %p145 = scmp.eq.s32.totalorder %s38, 0
      %p146 = por %p144, %p145
      %p147 = scmp.ne.s32.totalorder %s135, %s136
      %p148 = scmp.eq.s32.totalorder %s39, 3
      %p149 = por %p147, %p148
      %p151 = scmp.ne.s32.totalorder %s136, %s150
      %p152 = scmp.eq.s32.totalorder %s39, 0
      %p153 = por %p151, %p152
      %s155 = sadd.s32 %s154, 1
      %p158 = scmp.eq.s32.totalorder %s33, 3
      %p159 = scmp.ne.s32.totalorder %s154, %s156
      %p160 = scmp.eq.s32.totalorder %s33, 0
      %p161 = por %p159, %p160
      %p162 = scmp.ne.s32.totalorder %s154, %s156
      %p163 = scmp.eq.s32.totalorder %s38, 3
      %p164 = por %p162, %p163
      %p165 = scmp.ne.s32.totalorder %s156, %s157
      %p166 = scmp.eq.s32.totalorder %s38, 0
      %p167 = por %p165, %p166
      %p168 = scmp.ne.s32.totalorder %s156, %s157
      %p169 = scmp.eq.s32.totalorder %s39, 3
      %p170 = por %p168, %p169
      %p172 = scmp.ne.s32.totalorder %s157, %s171
      %p173 = scmp.eq.s32.totalorder %s39, 0
      %p174 = por %p172, %p173
      %s176 = sadd.s32 %s175, 1
      %p179 = scmp.eq.s32.totalorder %s33, 3
      %p180 = scmp.ne.s32.totalorder %s175, %s177
      %p181 = scmp.eq.s32.totalorder %s33, 0
      %p182 = por %p180, %p181
      %p183 = scmp.ne.s32.totalorder %s175, %s177
      %p184 = scmp.eq.s32.totalorder %s38, 3
      %p185 = por %p183, %p184
      %p186 = scmp.ne.s32.totalorder %s177, %s178
      %p187 = scmp.eq.s32.totalorder %s38, 0
      %p188 = por %p186, %p187
      %p189 = scmp.ne.s32.totalorder %s177, %s178
      %p190 = scmp.eq.s32.totalorder %s39, 3
      %p191 = por %p189, %p190
      %p193 = scmp.ne.s32.totalorder %s178, %s192
      %p194 = scmp.eq.s32.totalorder %s39, 0
      %p195 = por %p193, %p194
      %s197 = sadd.s32 %s196, 1
      %p200 = scmp.eq.s32.totalorder %s33, 3
      %p201 = scmp.ne.s32.totalorder %s196, %s198
      %p202 = scmp.eq.s32.totalorder %s33, 0
      %p203 = por %p201, %p202
      %p204 = scmp.ne.s32.totalorder %s196, %s198
      %p205 = scmp.eq.s32.totalorder %s38, 3
      %p206 = por %p204, %p205
      %p207 = scmp.ne.s32.totalorder %s198, %s199
      %p208 = scmp.eq.s32.totalorder %s38, 0
      %p209 = por %p207, %p208
      %p210 = scmp.ne.s32.totalorder %s198, %s199
      %p211 = scmp.eq.s32.totalorder %s39, 3
      %p212 = por %p210, %p211
      %p214 = scmp.ne.s32.totalorder %s199, %s213
      %p215 = scmp.eq.s32.totalorder %s39, 0
      %p216 = por %p214, %p215
      %s218 = sadd.s32 %s217, 1
      %p221 = scmp.eq.s32.totalorder %s33, 3
      %p222 = scmp.ne.s32.totalorder %s217, %s219
      %p223 = scmp.eq.s32.totalorder %s33, 0
      %p224 = por %p222, %p223
      %p225 = scmp.ne.s32.totalorder %s217, %s219
      %p226 = scmp.eq.s32.totalorder %s38, 3
      %p227 = por %p225, %p226
      %p228 = scmp.ne.s32.totalorder %s219, %s220
      %p229 = scmp.eq.s32.totalorder %s38, 0
      %p230 = por %p228, %p229
      %p231 = scmp.ne.s32.totalorder %s219, %s220
      %p232 = scmp.eq.s32.totalorder %s39, 3
      %p233 = por %p231, %p232
      %p235 = scmp.ne.s32.totalorder %s220, %s234
      %p236 = scmp.eq.s32.totalorder %s39, 0
      %p237 = por %p235, %p236
      %s239 = sadd.s32 %s238, 1
      %p242 = scmp.eq.s32.totalorder %s33, 3
      %p243 = scmp.ne.s32.totalorder %s238, %s240
      %p244 = scmp.eq.s32.totalorder %s33, 0
      %p245 = por %p243, %p244
      %p246 = scmp.ne.s32.totalorder %s238, %s240
      %p247 = scmp.eq.s32.totalorder %s38, 3
      %p248 = por %p246, %p247
      %p249 = scmp.ne.s32.totalorder %s240, %s241
      %p250 = scmp.eq.s32.totalorder %s38, 0
      %p251 = por %p249, %p250
      %p252 = scmp.ne.s32.totalorder %s240, %s241
      %p253 = scmp.eq.s32.totalorder %s39, 3
      %p254 = por %p252, %p253
      %p256 = scmp.ne.s32.totalorder %s241, %s255
      %p257 = scmp.eq.s32.totalorder %s39, 0
      %p258 = por %p256, %p257
      %s260 = sadd.s32 %s259, 1
      %p263 = scmp.eq.s32.totalorder %s33, 3
      %p264 = scmp.ne.s32.totalorder %s259, %s261
      %p265 = scmp.eq.s32.totalorder %s33, 0
      %p266 = por %p264, %p265
      %p267 = scmp.ne.s32.totalorder %s259, %s261
      %p268 = scmp.eq.s32.totalorder %s38, 3
      %p269 = por %p267, %p268
      %p270 = scmp.ne.s32.totalorder %s261, %s262
      %p271 = scmp.eq.s32.totalorder %s38, 0
      %p272 = por %p270, %p271
      %p273 = scmp.ne.s32.totalorder %s261, %s262
      %p274 = scmp.eq.s32.totalorder %s39, 3
      %p275 = por %p273, %p274
      %p277 = scmp.ne.s32.totalorder %s262, %s276
      %p278 = scmp.eq.s32.totalorder %s39, 0
      %p279 = por %p277, %p278
      %s281 = sadd.s32 %s280, 1
      %p284 = scmp.eq.s32.totalorder %s33, 3
      %p285 = scmp.ne.s32.totalorder %s280, %s282
      %p286 = scmp.eq.s32.totalorder %s33, 0
      %p287 = por %p285, %p286
      %p288 = scmp.ne.s32.totalorder %s280, %s282
      %p289 = scmp.eq.s32.totalorder %s38, 3
      %p290 = por %p288, %p289
      %p291 = scmp.ne.s32.totalorder %s282, %s283
      %p292 = scmp.eq.s32.totalorder %s38, 0
      %p293 = por %p291, %p292
      %p294 = scmp.ne.s32.totalorder %s282, %s283
      %p295 = scmp.eq.s32.totalorder %s39, 3
      %p296 = por %p294, %p295
      %p298 = scmp.ne.s32.totalorder %s283, %s297
      %p299 = scmp.eq.s32.totalorder %s39, 0
      %p300 = por %p298, %p299
      %s302 = sadd.s32 %s301, 1
      %p305 = scmp.eq.s32.totalorder %s33, 3
      %p306 = scmp.ne.s32.totalorder %s301, %s303
      %p307 = scmp.eq.s32.totalorder %s33, 0
      %p308 = por %p306, %p307
      %p309 = scmp.ne.s32.totalorder %s301, %s303
      %p310 = scmp.eq.s32.totalorder %s38, 3
      %p311 = por %p309, %p310
      %p312 = scmp.ne.s32.totalorder %s303, %s304
      %p313 = scmp.eq.s32.totalorder %s38, 0
      %p314 = por %p312, %p313
      %p315 = scmp.ne.s32.totalorder %s303, %s304
      %p316 = scmp.eq.s32.totalorder %s39, 3
      %p317 = por %p315, %p316
      %p319 = scmp.ne.s32.totalorder %s304, %s318
      %p320 = scmp.eq.s32.totalorder %s39, 0
      %p321 = por %p319, %p320
      %s323 = sadd.s32 %s322, 1
      %p326 = scmp.eq.s32.totalorder %s33, 3
      %p327 = scmp.ne.s32.totalorder %s322, %s324
      %p328 = scmp.eq.s32.totalorder %s33, 0
      %p329 = por %p327, %p328
      %p330 = scmp.ne.s32.totalorder %s322, %s324
      %p331 = scmp.eq.s32.totalorder %s38, 3
      %p332 = por %p330, %p331
      %p333 = scmp.ne.s32.totalorder %s324, %s325
      %p334 = scmp.eq.s32.totalorder %s38, 0
      %p335 = por %p333, %p334
      %p336 = scmp.ne.s32.totalorder %s324, %s325
      %p337 = scmp.eq.s32.totalorder %s39, 3
      %p338 = por %p336, %p337
      %p340 = scmp.ne.s32.totalorder %s325, %s339
      %p341 = scmp.eq.s32.totalorder %s39, 0
      %p342 = por %p340, %p341
      %s344 = sadd.s32 %s343, 1
      %p347 = scmp.eq.s32.totalorder %s33, 3
      %p348 = scmp.ne.s32.totalorder %s343, %s345
      %p349 = scmp.eq.s32.totalorder %s33, 0
      %p350 = por %p348, %p349
      %p351 = scmp.ne.s32.totalorder %s343, %s345
      %p352 = scmp.eq.s32.totalorder %s38, 3
      %p353 = por %p351, %p352
      %p354 = scmp.ne.s32.totalorder %s345, %s346
      %p355 = scmp.eq.s32.totalorder %s38, 0
      %p356 = por %p354, %p355
      %p357 = scmp.ne.s32.totalorder %s345, %s346
      %p358 = scmp.eq.s32.totalorder %s39, 3
      %p359 = por %p357, %p358
      %p361 = scmp.ne.s32.totalorder %s346, %s360
      %p362 = scmp.eq.s32.totalorder %s39, 0
      %p363 = por %p361, %p362
      %s365 = sadd.s32 %s364, 1
      %p368 = scmp.eq.s32.totalorder %s33, 3
      %p369 = scmp.ne.s32.totalorder %s364, %s366
      %p370 = scmp.eq.s32.totalorder %s33, 0
      %p371 = por %p369, %p370
      %p372 = scmp.ne.s32.totalorder %s364, %s366
      %p373 = scmp.eq.s32.totalorder %s38, 3
      %p374 = por %p372, %p373
      %p375 = scmp.ne.s32.totalorder %s366, %s367
      %p376 = scmp.eq.s32.totalorder %s38, 0
      %p377 = por %p375, %p376
      %p378 = scmp.ne.s32.totalorder %s366, %s367
      %p379 = scmp.eq.s32.totalorder %s39, 3
      %p380 = por %p378, %p379
      %p382 = scmp.ne.s32.totalorder %s367, %s381
      %p383 = scmp.eq.s32.totalorder %s39, 0
      %p384 = por %p382, %p383
      %s386 = sadd.s32 %s385, 1
      %p389 = scmp.eq.s32.totalorder %s33, 3
      %p390 = scmp.ne.s32.totalorder %s385, %s387
      %p391 = scmp.eq.s32.totalorder %s33, 0
      %p392 = por %p390, %p391
      %p393 = scmp.ne.s32.totalorder %s385, %s387
      %p394 = scmp.eq.s32.totalorder %s38, 3
      %p395 = por %p393, %p394
      %p396 = scmp.ne.s32.totalorder %s387, %s388
      %p397 = scmp.eq.s32.totalorder %s38, 0
      %p398 = por %p396, %p397
      %p399 = scmp.ne.s32.totalorder %s387, %s388
      %p400 = scmp.eq.s32.totalorder %s39, 3
      %p401 = por %p399, %p400
      %p403 = scmp.ne.s32.totalorder %s388, %s402
      %p404 = scmp.eq.s32.totalorder %s39, 0
      %p405 = por %p403, %p404
      %s406 = ssub.s32 %s40, %s52
      %p407 = scmp.eq.s32.totalorder %s406, 0
      %s409 = sadd.s32 %s408, 1
      %s410 = scalar_select %p407, %s408, %s409
      %p413 = pneg %p407
      %p414 = scmp.eq.s32.totalorder %s33, 3
      %p415 = por %p413, %p414
      %p416 = scmp.ne.s32.totalorder %s408, %s411
      %p417 = scmp.eq.s32.totalorder %s33, 0
      %p418 = por %p416, %p417
      %p419 = scmp.ne.s32.totalorder %s408, %s411
      %p420 = scmp.eq.s32.totalorder %s38, 3
      %p421 = por %p419, %p420
      %p422 = scmp.ne.s32.totalorder %s411, %s412
      %p423 = scmp.eq.s32.totalorder %s38, 0
      %p424 = por %p422, %p423
      %p425 = scmp.ne.s32.totalorder %s411, %s412
      %p426 = scmp.eq.s32.totalorder %s39, 3
      %p427 = por %p425, %p426
      %p429 = scmp.ne.s32.totalorder %s412, %s428
      %p430 = scmp.eq.s32.totalorder %s39, 0
      %p431 = por %p429, %p430
      %p432 = scmp.le.s32.totalorder 1, %s33
      %p433 = scmp.lt.s32.totalorder %s33, 5
      %p434 = pnand %p432, %p433
      %p435 = pneg %p434
      // Predicated region
      $region9: #{tpu_custom_call.1} parent=5 // pred_check
        _
      $region10: #{tpu_custom_call.1} parent=5 // pred_check_branch
        %437 = sbr.rel (%p434) target = $region12
      $region11: #{tpu_custom_call.1} parent=5 // pred_region
        %s438 = ssub.s32 %s33, 1
        // Predicated region
        $region13: #{tpu_custom_call.1} parent=11 // pred_check
          %p439 = pneg %p125
        $region14: #{tpu_custom_call.1} parent=11 // pred_check_branch
          %441 = sbr.rel (%p439) target = $region16
        $region15: #{tpu_custom_call.1} parent=11 // pred_region
          %s442 = smul.u32 16, %s43
          %s444 = ssub.s32 2048, 2048
          %445 = vsyncadd [#allocation7], %s444
          %s446 = smul.addr %s442, 128
          %s447 = scalar_lea.hbm %s2, %s446
          %s448 = sshll.u32 [#allocation8], 4
          %s449 = int_to_ptr.vmem [resolvable:$true] %s448
          %454 = dma.hbm_to_vmem [thread:$0]  %s447, 2048, %s449, [#allocation7], 128, 128, 8
        $region16: #{tpu_custom_call.1} parent=11 // pred_fallthru
          _
        // Predicated region
        $region17: #{tpu_custom_call.1} parent=11 // pred_check
          %p455 = pneg %p146
        $region18: #{tpu_custom_call.1} parent=11 // pred_check_branch
          %457 = sbr.rel (%p455) target = $region20
        $region19: #{tpu_custom_call.1} parent=11 // pred_region
          _
        $region20: #{tpu_custom_call.1} parent=11 // pred_fallthru
          _
        // Predicated region
        $region21: #{tpu_custom_call.1} parent=11 // pred_check
          %p458 = pneg %p167
        $region22: #{tpu_custom_call.1} parent=11 // pred_check_branch
          %460 = sbr.rel (%p458) target = $region24
        $region23: #{tpu_custom_call.1} parent=11 // pred_region
          _
        $region24: #{tpu_custom_call.1} parent=11 // pred_fallthru
          _
        // Predicated region
        $region25: #{tpu_custom_call.1} parent=11 // pred_check
          %p461 = pneg %p188
        $region26: #{tpu_custom_call.1} parent=11 // pred_check_branch
          %463 = sbr.rel (%p461) target = $region28
        $region27: #{tpu_custom_call.1} parent=11 // pred_region
          _
        $region28: #{tpu_custom_call.1} parent=11 // pred_fallthru
          _
        // Predicated region
        $region29: #{tpu_custom_call.1} parent=11 // pred_check
          %p464 = pneg %p209
        $region30: #{tpu_custom_call.1} parent=11 // pred_check_branch
          %466 = sbr.rel (%p464) target = $region32
        $region31: #{tpu_custom_call.1} parent=11 // pred_region
          %s468 = ssub.s32 4096, 4096
          %469 = vsyncadd [#allocation10], %s468
          %s470 = sshll.u32 [#allocation9], 4
          %s471 = int_to_ptr.vmem [resolvable:$true] %s470
          %476 = dma.hbm_to_vmem [thread:$0]  %s6, 4096, %s471, [#allocation10], 256, 256, 16
        $region32: #{tpu_custom_call.1} parent=11 // pred_fallthru
          _
        // Predicated region
        $region33: #{tpu_custom_call.1} parent=11 // pred_check
          %p477 = pneg %p230
        $region34: #{tpu_custom_call.1} parent=11 // pred_check_branch
          %479 = sbr.rel (%p477) target = $region36
        $region35: #{tpu_custom_call.1} parent=11 // pred_region
          %s481 = ssub.s32 4096, 4096
          %482 = vsyncadd [#allocation10], %s481
          %s483 = sshll.u32 [#allocation11], 4
          %s484 = int_to_ptr.vmem [resolvable:$true] %s483
          %489 = dma.hbm_to_vmem [thread:$0]  %s7, 4096, %s484, [#allocation10], 256, 256, 16
        $region36: #{tpu_custom_call.1} parent=11 // pred_fallthru
          _
        // Predicated region
        $region37: #{tpu_custom_call.1} parent=11 // pred_check
          %p490 = pneg %p251
        $region38: #{tpu_custom_call.1} parent=11 // pred_check_branch
          %492 = sbr.rel (%p490) target = $region40
        $region39: #{tpu_custom_call.1} parent=11 // pred_region
          _
        $region40: #{tpu_custom_call.1} parent=11 // pred_fallthru
          _
        // Predicated region
        $region41: #{tpu_custom_call.1} parent=11 // pred_check
          %p493 = pneg %p272
        $region42: #{tpu_custom_call.1} parent=11 // pred_check_branch
          %495 = sbr.rel (%p493) target = $region44
        $region43: #{tpu_custom_call.1} parent=11 // pred_region
          %s497 = ssub.s32 2048, 2048
          %498 = vsyncadd [#allocation13], %s497
          %s499 = sshll.u32 [#allocation12], 4
          %s500 = int_to_ptr.vmem [resolvable:$true] %s499
          %505 = dma.hbm_to_vmem [thread:$0]  %s9, 2048, %s500, [#allocation13], 128, 128, 8
        $region44: #{tpu_custom_call.1} parent=11 // pred_fallthru
          _
        // Predicated region
        $region45: #{tpu_custom_call.1} parent=11 // pred_check
          %p506 = pneg %p293
        $region46: #{tpu_custom_call.1} parent=11 // pred_check_branch
          %508 = sbr.rel (%p506) target = $region48
        $region47: #{tpu_custom_call.1} parent=11 // pred_region
          _
        $region48: #{tpu_custom_call.1} parent=11 // pred_fallthru
          _
        // Predicated region
        $region49: #{tpu_custom_call.1} parent=11 // pred_check
          %p509 = pneg %p314
        $region50: #{tpu_custom_call.1} parent=11 // pred_check_branch
          %511 = sbr.rel (%p509) target = $region52
        $region51: #{tpu_custom_call.1} parent=11 // pred_region
          %s513 = ssub.s32 2048, 2048
          %514 = vsyncadd [#allocation13], %s513
          %s515 = sshll.u32 [#allocation14], 4
          %s516 = int_to_ptr.vmem [resolvable:$true] %s515
          %521 = dma.hbm_to_vmem [thread:$0]  %s11, 2048, %s516, [#allocation13], 128, 128, 8
        $region52: #{tpu_custom_call.1} parent=11 // pred_fallthru
          _
        // Predicated region
        $region53: #{tpu_custom_call.1} parent=11 // pred_check
          %p522 = pneg %p335
        $region54: #{tpu_custom_call.1} parent=11 // pred_check_branch
          %524 = sbr.rel (%p522) target = $region56
        $region55: #{tpu_custom_call.1} parent=11 // pred_region
          _
        $region56: #{tpu_custom_call.1} parent=11 // pred_fallthru
          _
        // Predicated region
        $region57: #{tpu_custom_call.1} parent=11 // pred_check
          %p525 = pneg %p356
        $region58: #{tpu_custom_call.1} parent=11 // pred_check_branch
          %527 = sbr.rel (%p525) target = $region60
        $region59: #{tpu_custom_call.1} parent=11 // pred_region
          _
        $region60: #{tpu_custom_call.1} parent=11 // pred_fallthru
          _
        // Predicated region
        $region61: #{tpu_custom_call.1} parent=11 // pred_check
          %p528 = pneg %p377
        $region62: #{tpu_custom_call.1} parent=11 // pred_check_branch
          %530 = sbr.rel (%p528) target = $region64
        $region63: #{tpu_custom_call.1} parent=11 // pred_region
          _
        $region64: #{tpu_custom_call.1} parent=11 // pred_fallthru
          _
        // Predicated region
        $region65: #{tpu_custom_call.1} parent=11 // pred_check
          %p531 = pneg %p398
        $region66: #{tpu_custom_call.1} parent=11 // pred_check_branch
          %533 = sbr.rel (%p531) target = $region68
        $region67: #{tpu_custom_call.1} parent=11 // pred_region
          _
        $region68: #{tpu_custom_call.1} parent=11 // pred_fallthru
          _
      $region12: #{tpu_custom_call.1} parent=5 // pred_fallthru
        _
      %p534 = scmp.lt.s32.totalorder %s33, 4
      // Predicated region
      $region69: #{tpu_custom_call.1} parent=5 // pred_check
        %p535 = pneg %p534
      $region70: #{tpu_custom_call.1} parent=5 // pred_check_branch
        %537 = sbr.rel (%p535) target = $region72
      $region71: #{tpu_custom_call.1} parent=5 // pred_region
        // Predicated region
        $region73: #{tpu_custom_call.1} parent=71 // pred_check
          %p538 = pneg %p67
        $region74: #{tpu_custom_call.1} parent=71 // pred_check_branch
          %540 = sbr.rel (%p538) target = $region76
        $region75: #{tpu_custom_call.1} parent=71 // pred_region
          %s541 = sand.u32 %s57, 1
          %s542 = scalar_lea.sflag [#allocation4], %s541
          %s543 = sand.u32 %s57, 1
          %s544 = smul.addr %s543, 8
          %s545 = scalar_lea.vmem [#allocation3], %s544
          %s547 = ssub.s32 128, 128
          %548 = vsyncadd %s542, %s547
          %s549 = sadd.s32 %s41, %s40
          %s550 = smul.addr %s549, 128
          %s551 = scalar_lea.hbm %s0, %s550
          %s553 = sshll.u32 %s545, 4
          %s554 = int_to_ptr.vmem [resolvable:$true] %s553
          %556 = dma.hbm_to_vmem [thread:$0]  %s551, 128, %s554, %s542
        $region76: #{tpu_custom_call.1} parent=71 // pred_fallthru
          _
        // Predicated region
        $region77: #{tpu_custom_call.1} parent=71 // pred_check
          %p557 = pneg %p93
        $region78: #{tpu_custom_call.1} parent=71 // pred_check_branch
          %559 = sbr.rel (%p557) target = $region80
        $region79: #{tpu_custom_call.1} parent=71 // pred_region
          %s560 = sand.u32 %s33, 1
          %s561 = scalar_lea.sflag [#allocation7], %s560
          %s562 = sand.u32 %s83, 1
          %s563 = smul.addr %s562, 8
          %s564 = scalar_lea.vmem [#allocation6], %s563
          %s566 = ssub.s32 128, 128
          %567 = vsyncadd %s561, %s566
          %s568 = smul.addr %s40, 128
          %s569 = scalar_lea.hbm %s1, %s568
          %s571 = sshll.u32 %s564, 4
          %s572 = int_to_ptr.vmem [resolvable:$true] %s571
          %574 = dma.hbm_to_vmem [thread:$0]  %s569, 128, %s572, %s561
        $region80: #{tpu_custom_call.1} parent=71 // pred_fallthru
          _
      $region72: #{tpu_custom_call.1} parent=5 // pred_fallthru
        _
      %p575 = scmp.le.s32.totalorder 1, %s33
      %p576 = scmp.lt.s32.totalorder %s33, 5
      %p577 = pnand %p575, %p576
      %p578 = pneg %p577
      // Predicated region
      $region81: #{tpu_custom_call.1} parent=5 // pred_check
        _
      $region82: #{tpu_custom_call.1} parent=5 // pred_check_branch
        %580 = sbr.rel (%p577) target = $region84
      $region83: #{tpu_custom_call.1} parent=5 // pred_region
        %s581 = ssub.s32 %s33, 1
        %s582 = sand.u32 %s60, 1
        %s583 = scalar_lea.sflag [#allocation4], %s582
        %s584 = sand.u32 %s60, 1
        %s585 = smul.addr %s584, 8
        %s586 = scalar_lea.vmem [#allocation3], %s585
        // Predicated region
        $region85: #{tpu_custom_call.1} parent=83 // pred_check
          %p587 = pneg %p73
        $region86: #{tpu_custom_call.1} parent=83 // pred_check_branch
          %589 = sbr.rel (%p587) target = $region88
        $region87: #{tpu_custom_call.1} parent=83 // pred_region
          %590 = dma.done %s583, 128
        $region88: #{tpu_custom_call.1} parent=83 // pred_fallthru
          _
        %s591 = sand.u32 %s38, 1
        %s592 = scalar_lea.sflag [#allocation7], %s591
        %s593 = sand.u32 %s86, 1
        %s594 = smul.addr %s593, 8
        %s595 = scalar_lea.vmem [#allocation6], %s594
        // Predicated region
        $region89: #{tpu_custom_call.1} parent=83 // pred_check
          %p596 = pneg %p99
        $region90: #{tpu_custom_call.1} parent=83 // pred_check_branch
          %598 = sbr.rel (%p596) target = $region92
        $region91: #{tpu_custom_call.1} parent=83 // pred_region
          %599 = dma.done %s592, 128
        $region92: #{tpu_custom_call.1} parent=83 // pred_fallthru
          _
        // Predicated region
        $region93: #{tpu_custom_call.1} parent=83 // pred_check
          %p600 = pneg %p125
        $region94: #{tpu_custom_call.1} parent=83 // pred_check_branch
          %602 = sbr.rel (%p600) target = $region96
        $region95: #{tpu_custom_call.1} parent=83 // pred_region
          %603 = dma.done [#allocation7], 2048
        $region96: #{tpu_custom_call.1} parent=83 // pred_fallthru
          _
        // Predicated region
        $region97: #{tpu_custom_call.1} parent=83 // pred_check
          %p604 = pneg %p209
        $region98: #{tpu_custom_call.1} parent=83 // pred_check_branch
          %606 = sbr.rel (%p604) target = $region100
        $region99: #{tpu_custom_call.1} parent=83 // pred_region
          %607 = dma.done [#allocation10], 4096
        $region100: #{tpu_custom_call.1} parent=83 // pred_fallthru
          _
        // Predicated region
        $region101: #{tpu_custom_call.1} parent=83 // pred_check
          %p608 = pneg %p230
        $region102: #{tpu_custom_call.1} parent=83 // pred_check_branch
          %610 = sbr.rel (%p608) target = $region104
        $region103: #{tpu_custom_call.1} parent=83 // pred_region
          %611 = dma.done [#allocation10], 4096
        $region104: #{tpu_custom_call.1} parent=83 // pred_fallthru
          _
        // Predicated region
        $region105: #{tpu_custom_call.1} parent=83 // pred_check
          %p612 = pneg %p272
        $region106: #{tpu_custom_call.1} parent=83 // pred_check_branch
          %614 = sbr.rel (%p612) target = $region108
        $region107: #{tpu_custom_call.1} parent=83 // pred_region
          %615 = dma.done [#allocation13], 2048
        $region108: #{tpu_custom_call.1} parent=83 // pred_fallthru
          _
        // Predicated region
        $region109: #{tpu_custom_call.1} parent=83 // pred_check
          %p616 = pneg %p314
        $region110: #{tpu_custom_call.1} parent=83 // pred_check_branch
          %618 = sbr.rel (%p616) target = $region112
        $region111: #{tpu_custom_call.1} parent=83 // pred_region
          %619 = dma.done [#allocation13], 2048
        $region112: #{tpu_custom_call.1} parent=83 // pred_fallthru
          _
        %s620 = sand.u32 %s60, 1
        %s621 = scalar_lea.sflag [#allocation4], %s620
        %s622 = sand.u32 %s60, 1
        %s623 = smul.addr %s622, 8
        %s624 = scalar_lea.vmem [#allocation3], %s623
        %p625 = pneg %p73
        %p626 = pneg %p70
        %s627 = sand.u32 %s38, 1
        %s628 = scalar_lea.sflag [#allocation7], %s627
        %s629 = sand.u32 %s86, 1
        %s630 = smul.addr %s629, 8
        %s631 = scalar_lea.vmem [#allocation6], %s630
        %p632 = pneg %p99
        %p633 = pneg %p96
        %p634 = pneg %p125
        %p635 = pneg %p122
        %p636 = pneg %p146
        %p637 = pneg %p143
        %p638 = pneg %p167
        %p639 = pneg %p164
        %p640 = pneg %p188
        %p641 = pneg %p185
        %p642 = pneg %p209
        %p643 = pneg %p206
        %p644 = pneg %p230
        %p645 = pneg %p227
        %p646 = pneg %p251
        %p647 = pneg %p248
        %p648 = pneg %p272
        %p649 = pneg %p269
        %p650 = pneg %p293
        %p651 = pneg %p290
        %p652 = pneg %p314
        %p653 = pneg %p311
        %p654 = pneg %p335
        %p655 = pneg %p332
        %p656 = pneg %p356
        %p657 = pneg %p353
        %p658 = pneg %p377
        %p659 = pneg %p374
        %p660 = pneg %p398
        %p661 = pneg %p395
        %p662 = pneg %p424
        %p663 = pneg %p421
        %s664 = sand.u32 %s411, 1
        %s665 = scalar_lea.sflag [#allocation5], %s664
        %s666 = sand.u32 %s411, 1
        %s667 = smul.addr %s666, 8
        %s668 = scalar_lea.vmem [#allocation15], %s667
        %s669 = smul.u32 16, %s43
        %p670 = scmp.eq.s32.totalorder %s43, 0
        // Predicated region
        $region113: #{tpu_custom_call.1} parent=83 // pred_check
          %p671 = pneg %p670
        $region114: #{tpu_custom_call.1} parent=83 // pred_check_branch
          %673 = sbr.rel (%p671) target = $region116
        $region115: #{tpu_custom_call.1} parent=83 // pred_region
          %674 = vst [vmem:[#allocation2] sm:$0xff] 0.0
        $region116: #{tpu_custom_call.1} parent=83 // pred_fallthru
          _
        %v675 = vld [vmem:[#allocation2] sm:$0xff]
        %v676 = vld [vmem:[%s586] sm:$0xff]
        %v677 = vld [vmem:[#allocation8] sm:$0xff]
        %v678 = vld [vmem:[#allocation8 + $0x8] sm:$0xff]
        %v679 = vld [vmem:[#allocation8 + $0x10] sm:$0xff]
        %v680 = vld [vmem:[#allocation8 + $0x18] sm:$0xff]
        %v681 = vld [vmem:[#allocation8 + $0x20] sm:$0xff]
        %v682 = vld [vmem:[#allocation8 + $0x28] sm:$0xff]
        %v683 = vld [vmem:[#allocation8 + $0x30] sm:$0xff]
        %v684 = vld [vmem:[#allocation8 + $0x38] sm:$0xff]
        %v685 = vld [vmem:[#allocation8 + $0x40] sm:$0xff]
        %v686 = vld [vmem:[#allocation8 + $0x48] sm:$0xff]
        %v687 = vld [vmem:[#allocation8 + $0x50] sm:$0xff]
        %v688 = vld [vmem:[#allocation8 + $0x58] sm:$0xff]
        %v689 = vld [vmem:[#allocation8 + $0x60] sm:$0xff]
        %v690 = vld [vmem:[#allocation8 + $0x68] sm:$0xff]
        %v691 = vld [vmem:[#allocation8 + $0x70] sm:$0xff]
        %v692 = vld [vmem:[#allocation8 + $0x78] sm:$0xff]
        %693 = vmatprep.subr.mxu0 0.0
        %694 = vmatpush1.msra.mxu0 %v692
        %695 = vmatprep.subr.mxu0 0.0
        %696 = vmatpush1.msra.mxu0 %v691
        %697 = vmatprep.subr.mxu0 0.0
        %698 = vmatpush1.msra.mxu0 %v690
        %699 = vmatprep.subr.mxu0 0.0
        %700 = vmatpush1.msra.mxu0 %v689
        %701 = vmatprep.subr.mxu0 0.0
        %702 = vmatpush1.msra.mxu0 %v688
        %703 = vmatprep.subr.mxu0 0.0
        %704 = vmatpush1.msra.mxu0 %v687
        %705 = vmatprep.subr.mxu0 0.0
        %706 = vmatpush1.msra.mxu0 %v686
        %707 = vmatprep.subr.mxu0 0.0
        %708 = vmatpush1.msra.mxu0 %v685
        %709 = vmatprep.subr.mxu0 0.0
        %710 = vmatpush1.msra.mxu0 %v684
        %711 = vmatprep.subr.mxu0 0.0
        %712 = vmatpush1.msra.mxu0 %v683
        %713 = vmatprep.subr.mxu0 0.0
        %714 = vmatpush1.msra.mxu0 %v682
        %715 = vmatprep.subr.mxu0 0.0
        %716 = vmatpush1.msra.mxu0 %v681
        %717 = vmatprep.subr.mxu0 0.0
        %718 = vmatpush1.msra.mxu0 %v680
        %719 = vmatprep.subr.mxu0 0.0
        %720 = vmatpush1.msra.mxu0 %v679
        %721 = vmatprep.subr.mxu0 0.0
        %722 = vmatpush1.msra.mxu0 %v678
        %723 = vmatprep.subr.mxu0 0.0
        %724 = vmatpush1.msra.mxu0 %v677
        %725 = vmatprep.subr.mxu0 0.0
        %726 = vmatpush2.msra.mxu0 0.0
        %727 = vmatprep.subr.mxu0 0.0
        %728 = vmatpush2.msra.mxu0 0.0
        %729 = vmatprep.subr.mxu0 0.0
        %730 = vmatpush2.msra.mxu0 0.0
        %731 = vmatprep.subr.mxu0 0.0
        %732 = vmatpush2.msra.mxu0 0.0
        %733 = vmatprep.subr.mxu0 0.0
        %734 = vmatpush2.msra.mxu0 0.0
        %735 = vmatprep.subr.mxu0 0.0
        %736 = vmatpush2.msra.mxu0 0.0
        %737 = vmatprep.subr.mxu0 0.0
        %738 = vmatpush2.msra.mxu0 0.0
        %739 = vmatprep.subr.mxu0 0.0
        %740 = vmatpush2.msra.mxu0 0.0
        %741 = vmatprep.subr.mxu0 0.0
        %742 = vmatpush2.msra.mxu0 0.0
        %743 = vmatprep.subr.mxu0 0.0
        %744 = vmatpush2.msra.mxu0 0.0
        %745 = vmatprep.subr.mxu0 0.0
        %746 = vmatpush2.msra.mxu0 0.0
        %747 = vmatprep.subr.mxu0 0.0
        %748 = vmatpush2.msra.mxu0 0.0
        %749 = vmatprep.subr.mxu0 0.0
        %750 = vmatpush2.msra.mxu0 0.0
        %751 = vmatprep.subr.mxu0 0.0
        %752 = vmatpush2.msra.mxu0 0.0
        %753 = vmatprep.subr.mxu0 0.0
        %754 = vmatpush2.msra.mxu0 0.0
        %755 = vmatprep.subr.mxu0 0.0
        %756 = vmatpush2.msra.mxu0 0.0
        %757 = vmatprep.mubr.f32.mxu0 0.0
        %758 = vmatmul.mubr.f32.gmra.mxu0 %v676
        %v759 = vpop.f32.mrf.mxu0
        %v760 = vadd.f32 0.0, %v759
        %v761 = vpop.f32.mrf.mxu0
        %762 = vdwg.mxu0
        %v763 = vadd.f32 %v675, %v760
        %764 = vst [vmem:[#allocation2] sm:$0xff] %v763
        // Predicated region
        $region117: #{tpu_custom_call.1} parent=83 // pred_check
          %p765 = pneg %p670
        $region118: #{tpu_custom_call.1} parent=83 // pred_check_branch
          %767 = sbr.rel (%p765) target = $region120
        $region119: #{tpu_custom_call.1} parent=83 // pred_region
          %v768 = vld [vmem:[#allocation2] sm:$0xff]
          %v769 = vld [vmem:[%s3] sm:$0x1]
          %v771 = vlaneseq
          %v772 = vshrl.u32 %v771, 7
          %v773 = vsub.s32 0, %v772
          %v774 = vrot.slane %v769, %v773
          %v776 = vadd.f32 %v768, %v774
          %777 = vadd.xlane.f32.xlu0 %v776
          %v778 = vpop.xlane.xlu0 %777
          %v779 = vmul.f32 %v778, 0.03125
          %v780 = vsub.f32 %v776, %v779
          %v781 = vlaneseq
          %v782 = vand.u32 %v781, 127
          %vm783 = vcmp.lt.s32.totalorder %v782, 32
          %v784 = vsel %vm783, 1, 0
          %vm785 = vcmp.eq.s32.totalorder %v784, 1
          %v786 = vsel %vm785, %v780, 0.0
          %v787 = vmul.f32 %v786, %v786
          %788 = vadd.xlane.f32.xlu0 %v787
          %v789 = vpop.xlane.xlu0 %788
          %v790 = vmul.f32 %v789, 0.03125
          %v791 = vadd.f32 %v790, 1e-05
          %v792 = vrsqrt.pop %v791
          %v793 = vmul.f32 %v786, %v792
          %v794 = vld [vmem:[%s4] sm:$0x1]
          %v796 = vlaneseq
          %v797 = vshrl.u32 %v796, 7
          %v798 = vsub.s32 0, %v797
          %v799 = vrot.slane %v794, %v798
          %v801 = vmul.f32 %v793, %v799
          %v802 = vld [vmem:[%s5] sm:$0x1]
          %v804 = vlaneseq
          %v805 = vshrl.u32 %v804, 7
          %v806 = vsub.s32 0, %v805
          %v807 = vrot.slane %v802, %v806
          %v809 = vadd.f32 %v801, %v807
          %v810 = vtanh.pop %v809
          %v811 = vld [vmem:[%s595] sm:$0xff]
          %v812 = vld [vmem:[#allocation9] sm:$0xff]
          %v813 = vld [vmem:[#allocation9 + $0x8] sm:$0xff]
          %v814 = vld [vmem:[#allocation9 + $0x10] sm:$0xff]
          %v815 = vld [vmem:[#allocation9 + $0x18] sm:$0xff]
          %v816 = vld [vmem:[#allocation9 + $0x20] sm:$0xff]
          %v817 = vld [vmem:[#allocation9 + $0x28] sm:$0xff]
          %v818 = vld [vmem:[#allocation9 + $0x30] sm:$0xff]
          %v819 = vld [vmem:[#allocation9 + $0x38] sm:$0xff]
          %v820 = vld [vmem:[#allocation9 + $0x40] sm:$0xff]
          %v821 = vld [vmem:[#allocation9 + $0x48] sm:$0xff]
          %v822 = vld [vmem:[#allocation9 + $0x50] sm:$0xff]
          %v823 = vld [vmem:[#allocation9 + $0x58] sm:$0xff]
          %v824 = vld [vmem:[#allocation9 + $0x60] sm:$0xff]
          %v825 = vld [vmem:[#allocation9 + $0x68] sm:$0xff]
          %v826 = vld [vmem:[#allocation9 + $0x70] sm:$0xff]
          %v827 = vld [vmem:[#allocation9 + $0x78] sm:$0xff]
          %v828 = vld [vmem:[#allocation9 + $0x80] sm:$0xff]
          %v829 = vld [vmem:[#allocation9 + $0x88] sm:$0xff]
          %v830 = vld [vmem:[#allocation9 + $0x90] sm:$0xff]
          %v831 = vld [vmem:[#allocation9 + $0x98] sm:$0xff]
          %v832 = vld [vmem:[#allocation9 + $0xa0] sm:$0xff]
          %v833 = vld [vmem:[#allocation9 + $0xa8] sm:$0xff]
          %v834 = vld [vmem:[#allocation9 + $0xb0] sm:$0xff]
          %v835 = vld [vmem:[#allocation9 + $0xb8] sm:$0xff]
          %v836 = vld [vmem:[#allocation9 + $0xc0] sm:$0xff]
          %v837 = vld [vmem:[#allocation9 + $0xc8] sm:$0xff]
          %v838 = vld [vmem:[#allocation9 + $0xd0] sm:$0xff]
          %v839 = vld [vmem:[#allocation9 + $0xd8] sm:$0xff]
          %v840 = vld [vmem:[#allocation9 + $0xe0] sm:$0xff]
          %v841 = vld [vmem:[#allocation9 + $0xe8] sm:$0xff]
          %v842 = vld [vmem:[#allocation9 + $0xf0] sm:$0xff]
          %v843 = vld [vmem:[#allocation9 + $0xf8] sm:$0xff]
          %v844 = vld [vmem:[#allocation11] sm:$0xff]
          %v845 = vld [vmem:[#allocation11 + $0x8] sm:$0xff]
          %v846 = vld [vmem:[#allocation11 + $0x10] sm:$0xff]
          %v847 = vld [vmem:[#allocation11 + $0x18] sm:$0xff]
          %v848 = vld [vmem:[#allocation11 + $0x20] sm:$0xff]
          %v849 = vld [vmem:[#allocation11 + $0x28] sm:$0xff]
          %v850 = vld [vmem:[#allocation11 + $0x30] sm:$0xff]
          %v851 = vld [vmem:[#allocation11 + $0x38] sm:$0xff]
          %v852 = vld [vmem:[#allocation11 + $0x40] sm:$0xff]
          %v853 = vld [vmem:[#allocation11 + $0x48] sm:$0xff]
          %v854 = vld [vmem:[#allocation11 + $0x50] sm:$0xff]
          %v855 = vld [vmem:[#allocation11 + $0x58] sm:$0xff]
          %v856 = vld [vmem:[#allocation11 + $0x60] sm:$0xff]
          %v857 = vld [vmem:[#allocation11 + $0x68] sm:$0xff]
          %v858 = vld [vmem:[#allocation11 + $0x70] sm:$0xff]
          %v859 = vld [vmem:[#allocation11 + $0x78] sm:$0xff]
          %v860 = vld [vmem:[#allocation11 + $0x80] sm:$0xff]
          %v861 = vld [vmem:[#allocation11 + $0x88] sm:$0xff]
          %v862 = vld [vmem:[#allocation11 + $0x90] sm:$0xff]
          %v863 = vld [vmem:[#allocation11 + $0x98] sm:$0xff]
          %v864 = vld [vmem:[#allocation11 + $0xa0] sm:$0xff]
          %v865 = vld [vmem:[#allocation11 + $0xa8] sm:$0xff]
          %v866 = vld [vmem:[#allocation11 + $0xb0] sm:$0xff]
          %v867 = vld [vmem:[#allocation11 + $0xb8] sm:$0xff]
          %v868 = vld [vmem:[#allocation11 + $0xc0] sm:$0xff]
          %v869 = vld [vmem:[#allocation11 + $0xc8] sm:$0xff]
          %v870 = vld [vmem:[#allocation11 + $0xd0] sm:$0xff]
          %v871 = vld [vmem:[#allocation11 + $0xd8] sm:$0xff]
          %v872 = vld [vmem:[#allocation11 + $0xe0] sm:$0xff]
          %v873 = vld [vmem:[#allocation11 + $0xe8] sm:$0xff]
          %v874 = vld [vmem:[#allocation11 + $0xf0] sm:$0xff]
          %v875 = vld [vmem:[#allocation11 + $0xf8] sm:$0xff]
          %876 = vmatprep.subr.mxu0 %v875
          %877 = vmatpush1.msra.mxu0 %v874
          %878 = vmatprep.subr.mxu0 %v873
          %879 = vmatpush1.msra.mxu0 %v872
          %880 = vmatprep.subr.mxu0 %v871
          %881 = vmatpush1.msra.mxu0 %v870
          %882 = vmatprep.subr.mxu0 %v869
          %883 = vmatpush1.msra.mxu0 %v868
          %884 = vmatprep.subr.mxu0 %v867
          %885 = vmatpush1.msra.mxu0 %v866
          %886 = vmatprep.subr.mxu0 %v865
          %887 = vmatpush1.msra.mxu0 %v864
          %888 = vmatprep.subr.mxu0 %v863
          %889 = vmatpush1.msra.mxu0 %v862
          %890 = vmatprep.subr.mxu0 %v861
          %891 = vmatpush1.msra.mxu0 %v860
          %892 = vmatprep.subr.mxu0 %v859
          %893 = vmatpush1.msra.mxu0 %v858
          %894 = vmatprep.subr.mxu0 %v857
          %895 = vmatpush1.msra.mxu0 %v856
          %896 = vmatprep.subr.mxu0 %v855
          %897 = vmatpush1.msra.mxu0 %v854
          %898 = vmatprep.subr.mxu0 %v853
          %899 = vmatpush1.msra.mxu0 %v852
          %900 = vmatprep.subr.mxu0 %v851
          %901 = vmatpush1.msra.mxu0 %v850
          %902 = vmatprep.subr.mxu0 %v849
          %903 = vmatpush1.msra.mxu0 %v848
          %904 = vmatprep.subr.mxu0 %v847
          %905 = vmatpush1.msra.mxu0 %v846
          %906 = vmatprep.subr.mxu0 %v845
          %907 = vmatpush1.msra.mxu0 %v844
          %908 = vmatprep.subr.mxu0 0.0
          %909 = vmatpush2.msra.mxu0 0.0
          %910 = vmatprep.subr.mxu0 0.0
          %911 = vmatpush2.msra.mxu0 0.0
          %912 = vmatprep.subr.mxu0 0.0
          %913 = vmatpush2.msra.mxu0 0.0
          %914 = vmatprep.subr.mxu0 0.0
          %915 = vmatpush2.msra.mxu0 0.0
          %916 = vmatprep.subr.mxu0 0.0
          %917 = vmatpush2.msra.mxu0 0.0
          %918 = vmatprep.subr.mxu0 0.0
          %919 = vmatpush2.msra.mxu0 0.0
          %920 = vmatprep.subr.mxu0 0.0
          %921 = vmatpush2.msra.mxu0 0.0
          %922 = vmatprep.subr.mxu0 0.0
          %923 = vmatpush2.msra.mxu0 0.0
          %924 = vmatprep.subr.mxu0 0.0
          %925 = vmatpush2.msra.mxu0 0.0
          %926 = vmatprep.subr.mxu0 0.0
          %927 = vmatpush2.msra.mxu0 0.0
          %928 = vmatprep.subr.mxu0 0.0
          %929 = vmatpush2.msra.mxu0 0.0
          %930 = vmatprep.subr.mxu0 0.0
          %931 = vmatpush2.msra.mxu0 0.0
          %932 = vmatprep.subr.mxu0 0.0
          %933 = vmatpush2.msra.mxu0 0.0
          %934 = vmatprep.subr.mxu0 0.0
          %935 = vmatpush2.msra.mxu0 0.0
          %936 = vmatprep.subr.mxu0 0.0
          %937 = vmatpush2.msra.mxu0 0.0
          %938 = vmatprep.subr.mxu0 0.0
          %939 = vmatpush2.msra.mxu0 0.0
          %940 = vmatprep.mubr.f32.mxu0 0.0
          %941 = vmatmul.mubr.f32.gmra.mxu0 %v811
          %v942 = vpop.f32.mrf.mxu0
          %v943 = vadd.f32 0.0, %v942
          %v944 = vpop.f32.mrf.mxu0
          %v945 = vadd.f32 0.0, %v944
          %946 = vdwg.mxu0
          %947 = vmatprep.subr.mxu0 %v843
          %948 = vmatpush1.msra.mxu0 %v842
          %949 = vmatprep.subr.mxu0 %v841
          %950 = vmatpush1.msra.mxu0 %v840
          %951 = vmatprep.subr.mxu0 %v839
          %952 = vmatpush1.msra.mxu0 %v838
          %953 = vmatprep.subr.mxu0 %v837
          %954 = vmatpush1.msra.mxu0 %v836
          %955 = vmatprep.subr.mxu0 %v835
          %956 = vmatpush1.msra.mxu0 %v834
          %957 = vmatprep.subr.mxu0 %v833
          %958 = vmatpush1.msra.mxu0 %v832
          %959 = vmatprep.subr.mxu0 %v831
          %960 = vmatpush1.msra.mxu0 %v830
          %961 = vmatprep.subr.mxu0 %v829
          %962 = vmatpush1.msra.mxu0 %v828
          %963 = vmatprep.subr.mxu0 %v827
          %964 = vmatpush1.msra.mxu0 %v826
          %965 = vmatprep.subr.mxu0 %v825
          %966 = vmatpush1.msra.mxu0 %v824
          %967 = vmatprep.subr.mxu0 %v823
          %968 = vmatpush1.msra.mxu0 %v822
          %969 = vmatprep.subr.mxu0 %v821
          %970 = vmatpush1.msra.mxu0 %v820
          %971 = vmatprep.subr.mxu0 %v819
          %972 = vmatpush1.msra.mxu0 %v818
          %973 = vmatprep.subr.mxu0 %v817
          %974 = vmatpush1.msra.mxu0 %v816
          %975 = vmatprep.subr.mxu0 %v815
          %976 = vmatpush1.msra.mxu0 %v814
          %977 = vmatprep.subr.mxu0 %v813
          %978 = vmatpush1.msra.mxu0 %v812
          %979 = vmatprep.subr.mxu0 0.0
          %980 = vmatpush2.msra.mxu0 0.0
          %981 = vmatprep.subr.mxu0 0.0
          %982 = vmatpush2.msra.mxu0 0.0
          %983 = vmatprep.subr.mxu0 0.0
          %984 = vmatpush2.msra.mxu0 0.0
          %985 = vmatprep.subr.mxu0 0.0
          %986 = vmatpush2.msra.mxu0 0.0
          %987 = vmatprep.subr.mxu0 0.0
          %988 = vmatpush2.msra.mxu0 0.0
          %989 = vmatprep.subr.mxu0 0.0
          %990 = vmatpush2.msra.mxu0 0.0
          %991 = vmatprep.subr.mxu0 0.0
          %992 = vmatpush2.msra.mxu0 0.0
          %993 = vmatprep.subr.mxu0 0.0
          %994 = vmatpush2.msra.mxu0 0.0
          %995 = vmatprep.subr.mxu0 0.0
          %996 = vmatpush2.msra.mxu0 0.0
          %997 = vmatprep.subr.mxu0 0.0
          %998 = vmatpush2.msra.mxu0 0.0
          %999 = vmatprep.subr.mxu0 0.0
          %1000 = vmatpush2.msra.mxu0 0.0
          %1001 = vmatprep.subr.mxu0 0.0
          %1002 = vmatpush2.msra.mxu0 0.0
          %1003 = vmatprep.subr.mxu0 0.0
          %1004 = vmatpush2.msra.mxu0 0.0
          %1005 = vmatprep.subr.mxu0 0.0
          %1006 = vmatpush2.msra.mxu0 0.0
          %1007 = vmatprep.subr.mxu0 0.0
          %1008 = vmatpush2.msra.mxu0 0.0
          %1009 = vmatprep.subr.mxu0 0.0
          %1010 = vmatpush2.msra.mxu0 0.0
          %1011 = vmatprep.mubr.f32.mxu0 0.0
          %1012 = vmatmul.mubr.f32.gmra.mxu0 %v810
          %v1013 = vpop.f32.mrf.mxu0
          %v1014 = vadd.f32 %v943, %v1013
          %v1015 = vpop.f32.mrf.mxu0
          %v1016 = vadd.f32 %v945, %v1015
          %1017 = vdwg.mxu0
          %v1018 = vld [vmem:[%s8] sm:$0x3]
          %v1020 = vlaneseq
          %v1021 = vshrl.u32 %v1020, 7
          %v1022 = vsub.s32 0, %v1021
          %v1023 = vrot.slane %v1018, %v1022
          %v1024 = vlaneseq
          %v1025 = vshrl.u32 %v1024, 7
          %v1026 = vsub.s32 1, %v1025
          %v1027 = vrot.slane %v1018, %v1026
          %v1030 = vadd.f32 %v1014, %v1023
          %v1031 = vadd.f32 %v1016, %v1027
          %v1032 = vmax.f32 %v1030, 0.0
          %v1033 = vmax.f32 %v1031, 0.0
          %v1034 = vld [vmem:[#allocation12] sm:$0xff]
          %v1035 = vld [vmem:[#allocation12 + $0x8] sm:$0xff]
          %v1036 = vld [vmem:[#allocation12 + $0x10] sm:$0xff]
          %v1037 = vld [vmem:[#allocation12 + $0x18] sm:$0xff]
          %v1038 = vld [vmem:[#allocation12 + $0x20] sm:$0xff]
          %v1039 = vld [vmem:[#allocation12 + $0x28] sm:$0xff]
          %v1040 = vld [vmem:[#allocation12 + $0x30] sm:$0xff]
          %v1041 = vld [vmem:[#allocation12 + $0x38] sm:$0xff]
          %v1042 = vld [vmem:[#allocation12 + $0x40] sm:$0xff]
          %v1043 = vld [vmem:[#allocation12 + $0x48] sm:$0xff]
          %v1044 = vld [vmem:[#allocation12 + $0x50] sm:$0xff]
          %v1045 = vld [vmem:[#allocation12 + $0x58] sm:$0xff]
          %v1046 = vld [vmem:[#allocation12 + $0x60] sm:$0xff]
          %v1047 = vld [vmem:[#allocation12 + $0x68] sm:$0xff]
          %v1048 = vld [vmem:[#allocation12 + $0x70] sm:$0xff]
          %v1049 = vld [vmem:[#allocation12 + $0x78] sm:$0xff]
          %v1050 = vld [vmem:[%s10] sm:$0x1]
          %v1052 = vlaneseq
          %v1053 = vshrl.u32 %v1052, 7
          %v1054 = vsub.s32 0, %v1053
          %v1055 = vrot.slane %v1050, %v1054
          %1057 = vmatprep.subr.mxu0 0.0
          %1058 = vmatpush1.msra.mxu0 %v1049
          %1059 = vmatprep.subr.mxu0 0.0
          %1060 = vmatpush1.msra.mxu0 %v1048
          %1061 = vmatprep.subr.mxu0 0.0
          %1062 = vmatpush1.msra.mxu0 %v1047
          %1063 = vmatprep.subr.mxu0 0.0
          %1064 = vmatpush1.msra.mxu0 %v1046
          %1065 = vmatprep.subr.mxu0 0.0
          %1066 = vmatpush1.msra.mxu0 %v1045
          %1067 = vmatprep.subr.mxu0 0.0
          %1068 = vmatpush1.msra.mxu0 %v1044
          %1069 = vmatprep.subr.mxu0 0.0
          %1070 = vmatpush1.msra.mxu0 %v1043
          %1071 = vmatprep.subr.mxu0 0.0
          %1072 = vmatpush1.msra.mxu0 %v1042
          %1073 = vmatprep.subr.mxu0 0.0
          %1074 = vmatpush1.msra.mxu0 %v1041
          %1075 = vmatprep.subr.mxu0 0.0
          %1076 = vmatpush1.msra.mxu0 %v1040
          %1077 = vmatprep.subr.mxu0 0.0
          %1078 = vmatpush1.msra.mxu0 %v1039
          %1079 = vmatprep.subr.mxu0 0.0
          %1080 = vmatpush1.msra.mxu0 %v1038
          %1081 = vmatprep.subr.mxu0 0.0
          %1082 = vmatpush1.msra.mxu0 %v1037
          %1083 = vmatprep.subr.mxu0 0.0
          %1084 = vmatpush1.msra.mxu0 %v1036
          %1085 = vmatprep.subr.mxu0 0.0
          %1086 = vmatpush1.msra.mxu0 %v1035
          %1087 = vmatprep.subr.mxu0 0.0
          %1088 = vmatpush1.msra.mxu0 %v1034
          %1089 = vmatprep.subr.mxu0 0.0
          %1090 = vmatpush2.msra.mxu0 0.0
          %1091 = vmatprep.subr.mxu0 0.0
          %1092 = vmatpush2.msra.mxu0 0.0
          %1093 = vmatprep.subr.mxu0 0.0
          %1094 = vmatpush2.msra.mxu0 0.0
          %1095 = vmatprep.subr.mxu0 0.0
          %1096 = vmatpush2.msra.mxu0 0.0
          %1097 = vmatprep.subr.mxu0 0.0
          %1098 = vmatpush2.msra.mxu0 0.0
          %1099 = vmatprep.subr.mxu0 0.0
          %1100 = vmatpush2.msra.mxu0 0.0
          %1101 = vmatprep.subr.mxu0 0.0
          %1102 = vmatpush2.msra.mxu0 0.0
          %1103 = vmatprep.subr.mxu0 0.0
          %1104 = vmatpush2.msra.mxu0 0.0
          %1105 = vmatprep.subr.mxu0 0.0
          %1106 = vmatpush2.msra.mxu0 0.0
          %1107 = vmatprep.subr.mxu0 0.0
          %1108 = vmatpush2.msra.mxu0 0.0
          %1109 = vmatprep.subr.mxu0 0.0
          %1110 = vmatpush2.msra.mxu0 0.0
          %1111 = vmatprep.subr.mxu0 0.0
          %1112 = vmatpush2.msra.mxu0 0.0
          %1113 = vmatprep.subr.mxu0 0.0
          %1114 = vmatpush2.msra.mxu0 0.0
          %1115 = vmatprep.subr.mxu0 0.0
          %1116 = vmatpush2.msra.mxu0 0.0
          %1117 = vmatprep.subr.mxu0 0.0
          %1118 = vmatpush2.msra.mxu0 0.0
          %1119 = vmatprep.subr.mxu0 0.0
          %1120 = vmatpush2.msra.mxu0 0.0
          %1121 = vmatprep.mubr.f32.mxu0 0.0
          %1122 = vmatmul.mubr.f32.gmra.mxu0 %v1032
          %v1123 = vpop.f32.mrf.mxu0
          %v1124 = vadd.f32 %v1055, %v1123
          %v1125 = vpop.f32.mrf.mxu0
          %1126 = vdwg.mxu0
          %v1127 = vmax.f32 %v1124, 0.0
          %v1128 = vld [vmem:[#allocation14] sm:$0xff]
          %v1129 = vld [vmem:[#allocation14 + $0x8] sm:$0xff]
          %v1130 = vld [vmem:[#allocation14 + $0x10] sm:$0xff]
          %v1131 = vld [vmem:[#allocation14 + $0x18] sm:$0xff]
          %v1132 = vld [vmem:[#allocation14 + $0x20] sm:$0xff]
          %v1133 = vld [vmem:[#allocation14 + $0x28] sm:$0xff]
          %v1134 = vld [vmem:[#allocation14 + $0x30] sm:$0xff]
          %v1135 = vld [vmem:[#allocation14 + $0x38] sm:$0xff]
          %v1136 = vld [vmem:[#allocation14 + $0x40] sm:$0xff]
          %v1137 = vld [vmem:[#allocation14 + $0x48] sm:$0xff]
          %v1138 = vld [vmem:[#allocation14 + $0x50] sm:$0xff]
          %v1139 = vld [vmem:[#allocation14 + $0x58] sm:$0xff]
          %v1140 = vld [vmem:[#allocation14 + $0x60] sm:$0xff]
          %v1141 = vld [vmem:[#allocation14 + $0x68] sm:$0xff]
          %v1142 = vld [vmem:[#allocation14 + $0x70] sm:$0xff]
          %v1143 = vld [vmem:[#allocation14 + $0x78] sm:$0xff]
          %v1144 = vld [vmem:[%s12] sm:$0x1]
          %v1146 = vlaneseq
          %v1147 = vshrl.u32 %v1146, 7
          %v1148 = vsub.s32 0, %v1147
          %v1149 = vrot.slane %v1144, %v1148
          %1151 = vmatprep.subr.mxu0 0.0
          %1152 = vmatpush1.msra.mxu0 %v1143
          %1153 = vmatprep.subr.mxu0 0.0
          %1154 = vmatpush1.msra.mxu0 %v1142
          %1155 = vmatprep.subr.mxu0 0.0
          %1156 = vmatpush1.msra.mxu0 %v1141
          %1157 = vmatprep.subr.mxu0 0.0
          %1158 = vmatpush1.msra.mxu0 %v1140
          %1159 = vmatprep.subr.mxu0 0.0
          %1160 = vmatpush1.msra.mxu0 %v1139
          %1161 = vmatprep.subr.mxu0 0.0
          %1162 = vmatpush1.msra.mxu0 %v1138
          %1163 = vmatprep.subr.mxu0 0.0
          %1164 = vmatpush1.msra.mxu0 %v1137
          %1165 = vmatprep.subr.mxu0 0.0
          %1166 = vmatpush1.msra.mxu0 %v1136
          %1167 = vmatprep.subr.mxu0 0.0
          %1168 = vmatpush1.msra.mxu0 %v1135
          %1169 = vmatprep.subr.mxu0 0.0
          %1170 = vmatpush1.msra.mxu0 %v1134
          %1171 = vmatprep.subr.mxu0 0.0
          %1172 = vmatpush1.msra.mxu0 %v1133
          %1173 = vmatprep.subr.mxu0 0.0
          %1174 = vmatpush1.msra.mxu0 %v1132
          %1175 = vmatprep.subr.mxu0 0.0
          %1176 = vmatpush1.msra.mxu0 %v1131
          %1177 = vmatprep.subr.mxu0 0.0
          %1178 = vmatpush1.msra.mxu0 %v1130
          %1179 = vmatprep.subr.mxu0 0.0
          %1180 = vmatpush1.msra.mxu0 %v1129
          %1181 = vmatprep.subr.mxu0 0.0
          %1182 = vmatpush1.msra.mxu0 %v1128
          %1183 = vmatprep.subr.mxu0 0.0
          %1184 = vmatpush2.msra.mxu0 0.0
          %1185 = vmatprep.subr.mxu0 0.0
          %1186 = vmatpush2.msra.mxu0 0.0
          %1187 = vmatprep.subr.mxu0 0.0
          %1188 = vmatpush2.msra.mxu0 0.0
          %1189 = vmatprep.subr.mxu0 0.0
          %1190 = vmatpush2.msra.mxu0 0.0
          %1191 = vmatprep.subr.mxu0 0.0
          %1192 = vmatpush2.msra.mxu0 0.0
          %1193 = vmatprep.subr.mxu0 0.0
          %1194 = vmatpush2.msra.mxu0 0.0
          %1195 = vmatprep.subr.mxu0 0.0
          %1196 = vmatpush2.msra.mxu0 0.0
          %1197 = vmatprep.subr.mxu0 0.0
          %1198 = vmatpush2.msra.mxu0 0.0
          %1199 = vmatprep.subr.mxu0 0.0
          %1200 = vmatpush2.msra.mxu0 0.0
          %1201 = vmatprep.subr.mxu0 0.0
          %1202 = vmatpush2.msra.mxu0 0.0
          %1203 = vmatprep.subr.mxu0 0.0
          %1204 = vmatpush2.msra.mxu0 0.0
          %1205 = vmatprep.subr.mxu0 0.0
          %1206 = vmatpush2.msra.mxu0 0.0
          %1207 = vmatprep.subr.mxu0 0.0
          %1208 = vmatpush2.msra.mxu0 0.0
          %1209 = vmatprep.subr.mxu0 0.0
          %1210 = vmatpush2.msra.mxu0 0.0
          %1211 = vmatprep.subr.mxu0 0.0
          %1212 = vmatpush2.msra.mxu0 0.0
          %1213 = vmatprep.subr.mxu0 0.0
          %1214 = vmatpush2.msra.mxu0 0.0
          %1215 = vmatprep.mubr.f32.mxu0 0.0
          %1216 = vmatmul.mubr.f32.gmra.mxu0 %v1033
          %v1217 = vpop.f32.mrf.mxu0
          %v1218 = vadd.f32 %v1149, %v1217
          %v1219 = vpop.f32.mrf.mxu0
          %1220 = vdwg.mxu0
          %v1221 = vmax.f32 %v1218, 0.0
          %v1222 = vld [vmem:[%s13] sm:$0x1]
          %v1224 = vlaneseq
          %v1225 = vshrl.u32 %v1224, 7
          %v1226 = vsub.s32 0, %v1225
          %v1227 = vrot.slane %v1222, %v1226
          %v1229 = vmul.f32 %v1127, %v1227
          %1230 = vadd.xlane.f32.xlu0 %v1229
          %v1231 = vpop.xlane.xlu0 %1230
          %v1232 = vld [vmem:[%s14] sm:$0x1]
          %v1234 = vlaneseq
          %v1235 = vshrl.u32 %v1234, 7
          %v1236 = vsub.s32 0, %v1235
          %v1237 = vrot.slane %v1232, %v1236
          %v1239 = vmul.f32 %v1221, %v1237
          %1240 = vadd.xlane.f32.xlu0 %v1239
          %v1241 = vpop.xlane.xlu0 %1240
          %vm1242 = vcmp.eq.s32.totalorder %v782, 0
          %vm1243 = vcmp.eq.s32.totalorder %v782, 1
          %v1244 = vsel %vm1243, 1, 0
          %vm1245 = vcmp.eq.s32.totalorder %v1244, 1
          %v1246 = vsel %vm1245, %v1241, 0.0
          %v1247 = vsel %vm1242, 1, 0
          %vm1248 = vcmp.eq.s32.totalorder %v1247, 1
          %v1249 = vsel %vm1248, %v1231, %v1246
          %v1250 = vld [vmem:[%s15] sm:$0x1]
          %v1252 = vlaneseq
          %v1253 = vshrl.u32 %v1252, 7
          %v1254 = vsub.s32 0, %v1253
          %v1255 = vrot.slane %v1250, %v1254
          %v1257 = vadd.f32 %v1249, %v1255
          %1258 = vst [vmem:[%s668] sm:$0xff] %v1257
        $region120: #{tpu_custom_call.1} parent=83 // pred_fallthru
          _
        %s1259 = sand.u32 %s411, 1
        %s1260 = scalar_lea.sflag [#allocation5], %s1259
        %s1261 = sand.u32 %s411, 1
        %s1262 = smul.addr %s1261, 8
        %s1263 = scalar_lea.vmem [#allocation15], %s1262
        // Predicated region
        $region121: #{tpu_custom_call.1} parent=83 // pred_check
          %p1264 = pneg %p421
        $region122: #{tpu_custom_call.1} parent=83 // pred_check_branch
          %1266 = sbr.rel (%p1264) target = $region124
        $region123: #{tpu_custom_call.1} parent=83 // pred_region
          %s1268 = ssub.s32 128, 128
          %1269 = vsyncadd %s1260, %s1268
          %s1270 = smul.addr %s42, 128
          %s1271 = scalar_lea.hbm %s16, %s1270
          %s1273 = sshll.u32 %s1263, 4
          %s1274 = int_to_ptr.vmem [resolvable:$true] %s1273
          %1276 = dma.vmem_to_hbm [thread:$0]  %s1274, 128, %s1271, %s1260
        $region124: #{tpu_custom_call.1} parent=83 // pred_fallthru
          _
      $region84: #{tpu_custom_call.1} parent=5 // pred_fallthru
        _
      %p1277 = scmp.le.s32.totalorder 2, %s33
      // Predicated region
      $region125: #{tpu_custom_call.1} parent=5 // pred_check
        %p1278 = pneg %p1277
      $region126: #{tpu_custom_call.1} parent=5 // pred_check_branch
        %1280 = sbr.rel (%p1278) target = $region128
      $region127: #{tpu_custom_call.1} parent=5 // pred_region
        %s1281 = ssub.s32 %s33, 2
        // Predicated region
        $region129: #{tpu_custom_call.1} parent=127 // pred_check
          %p1282 = pneg %p427
        $region130: #{tpu_custom_call.1} parent=127 // pred_check_branch
          %1284 = sbr.rel (%p1282) target = $region132
        $region131: #{tpu_custom_call.1} parent=127 // pred_region
          %s1285 = sand.u32 %s412, 1
          %s1286 = scalar_lea.sflag [#allocation5], %s1285
          %s1287 = sand.u32 %s412, 1
          %s1288 = smul.addr %s1287, 8
          %s1289 = scalar_lea.vmem [#allocation15], %s1288
          %1290 = dma.done %s1286, 128
        $region132: #{tpu_custom_call.1} parent=127 // pred_fallthru
          _
      $region128: #{tpu_custom_call.1} parent=5 // pred_fallthru
        _
    $region6: #{tpu_custom_call.1} parent=1 // loop_footer
      %s37 = sadd.s32 1, %s33
    $region7: #{tpu_custom_call.1} parent=1 // loop_footer_branch
      %32 = sbr.rel target = $region3
    $region8: #{tpu_custom_call.1} parent=1 // loop_exit
      _
    %1291 = vsyncpa [#allocation4], 1
    %s1292 = scalar_lea.sflag [#allocation4], 1
    %1293 = vsyncpa %s1292, 1
    %1294 = vsyncpa [#allocation7], 1
    %s1295 = scalar_lea.sflag [#allocation7], 1
    %1296 = vsyncpa %s1295, 1
    %1297 = vsyncpa [#allocation10], 1
    %1298 = vsyncpa [#allocation13], 1
    %1299 = vsyncpa [#allocation5], 1
    %s1300 = scalar_lea.sflag [#allocation5], 1
    %1301 = vsyncpa %s1300, 1

</llo_original>
